<compile_context>
chip_gen: v5e
topology: v5e:2x2
jax: 0.10.0
libtpu: 0.0.40
codegen_flags: <defaults>
</compile_context>

<pallas_src>
import math
import numpy as np
import jax
import jax.numpy as jnp
from jax.experimental import pallas as pl
from jax.experimental.pallas import tpu as pltpu


CP = 128        # lane-padded output-channel dimension
TM = 512        # M tile for the layer-1 im2col GEMM
BM_BN = 1024    # row tile for the BN/ReLU elementwise pass


def _round_up(x, m):
    return ((x + m - 1) // m) * m


def length_narrow(length, kernel_size, stride, padding, dilation=1):
    # torch.div(..., rounding_mode='trunc') on non-negative ints == floor div
    return (length + 2 * padding - dilation * (kernel_size - 1) - 1 + stride) // stride


# ----------------------------- Pallas kernels ------------------------------

def _gemm_mask_stats_kernel(a_ref, b_ref, m_ref, y_ref, stats_ref):
    """Single-K-step bf16 GEMM (f32 MXU accumulation); epilogue applies the
    sequence (row) mask, stores bf16, and emits per-M-block BN partials."""
    acc = jnp.dot(a_ref[...], b_ref[...], preferred_element_type=jnp.float32)
    ym = acc * m_ref[...]                                  # (TM, CP) * (TM, 1)
    y_ref[...] = ym.astype(y_ref.dtype)
    stats_ref[0, 0:1, :] = jnp.sum(ym, axis=0, keepdims=True)
    stats_ref[0, 1:2, :] = jnp.sum(ym * ym, axis=0, keepdims=True)


def conv_gemm_mask_stats(a, b, rowmask, tm):
    """(Mp, Kp)bf16 @ (Kp, CP)bf16 -> masked (Mp, CP)bf16 + (nmb, 2, CP)f32 stats."""
    Mp, Kp = a.shape
    nmb = Mp // tm
    return pl.pallas_call(
        _gemm_mask_stats_kernel,
        out_shape=(jax.ShapeDtypeStruct((Mp, CP), jnp.bfloat16),
                   jax.ShapeDtypeStruct((nmb, 2, CP), jnp.float32)),
        grid=(nmb,),
        in_specs=[pl.BlockSpec((tm, Kp), lambda i: (i, 0)),
                  pl.BlockSpec((Kp, CP), lambda i: (0, 0)),   # weights resident
                  pl.BlockSpec((tm, 1), lambda i: (i, 0))],
        out_specs=(pl.BlockSpec((tm, CP), lambda i: (i, 0)),
                   pl.BlockSpec((1, 2, CP), lambda i: (i, 0, 0))),
        compiler_params=pltpu.CompilerParams(dimension_semantics=("parallel",)),
    )(a, b, rowmask)


def _conv_kh_stream_kernel(a_ref, b_ref, m_ref, y_ref, stats_ref, acc_ref):
    """kh-decomposed conv: each grid step accumulates one kernel-row sub-GEMM
    (K = Cin*kw) into an f32 VMEM accumulator; last step applies the sequence
    mask, stores bf16 and emits BN partial statistics."""
    i = pl.program_id(2)

    @pl.when(i == 0)
    def _():
        acc_ref[...] = jnp.zeros_like(acc_ref)

    acc_ref[...] += jnp.dot(a_ref[0, 0], b_ref[0],
                            preferred_element_type=jnp.float32)

    @pl.when(i == pl.num_programs(2) - 1)
    def _():
        ym = acc_ref[...] * m_ref[0]                       # (Wout, CP) * (Wout, 1)
        y_ref[0] = ym.astype(y_ref.dtype)
        stats_ref[0, 0:1, :] = jnp.sum(ym, axis=0, keepdims=True)
        stats_ref[0, 1:2, :] = jnp.sum(ym * ym, axis=0, keepdims=True)


def conv_stream_kh(xw, wrows, rowmask, N, Hout, Wout, sh):
    """Streamed conv: xw (sh*N, Hh, Wout, Cin*kw)bf16 width-only im2col (phase
    split along H), wrows (kh, Cin*kw, CP)bf16, rowmask (N, Wout, 1)f32."""
    _, Hh, _, Ckw = xw.shape
    kh = wrows.shape[0]
    return pl.pallas_call(
        _conv_kh_stream_kernel,
        out_shape=(jax.ShapeDtypeStruct((N * Hout, Wout, CP), jnp.bfloat16),
                   jax.ShapeDtypeStruct((N * Hout, 2, CP), jnp.float32)),
        grid=(N, Hout, kh),
        in_specs=[pl.BlockSpec((1, 1, Wout, Ckw),
                               lambda n, oh, i: ((i % sh) * N + n, i // sh + oh, 0, 0)),
                  pl.BlockSpec((1, Ckw, CP), lambda n, oh, i: (i, 0, 0)),
                  pl.BlockSpec((1, Wout, 1), lambda n, oh, i: (n, 0, 0))],
        out_specs=(pl.BlockSpec((1, Wout, CP), lambda n, oh, i: (n * Hout + oh, 0, 0)),
                   pl.BlockSpec((1, 2, CP), lambda n, oh, i: (n * Hout + oh, 0, 0))),
        scratch_shapes=[pltpu.VMEM((Wout, CP), jnp.float32)],
        compiler_params=pltpu.CompilerParams(
            dimension_semantics=("parallel", "parallel", "arbitrary")),
    )(xw, wrows, rowmask)
# TODO(synk): for very long sequences a single (Wout, Cin*kw) A tile may exceed VMEM;
# a further split of the Wout row into sub-blocks would be needed in that regime.


def _bn_relu_kernel(x_ref, scale_ref, shift_ref, o_ref):
    x = x_ref[...].astype(jnp.float32)
    o_ref[...] = jnp.maximum(x * scale_ref[...] + shift_ref[...], 0.0).astype(o_ref.dtype)


def bn_relu_flat(x, scale, shift, bm):
    R, cp = x.shape
    return pl.pallas_call(
        _bn_relu_kernel,
        out_shape=jax.ShapeDtypeStruct((R, cp), jnp.bfloat16),
        grid=(R // bm,),
        in_specs=[pl.BlockSpec((bm, cp), lambda i: (i, 0)),
                  pl.BlockSpec((1, cp), lambda i: (0, 0)),
                  pl.BlockSpec((1, cp), lambda i: (0, 0))],
        out_specs=pl.BlockSpec((bm, cp), lambda i: (i, 0)),
        compiler_params=pltpu.CompilerParams(dimension_semantics=("parallel",)),
    )(x, scale, shift)


# ------------------------------- JAX glue ----------------------------------

def _bn_scale_shift(stats, count, gamma, beta, Cout):
    s = jnp.sum(stats, axis=0)                       # (2, CP): row0 = sum, row1 = sumsq
    mean = s[0] / count
    var = jnp.maximum(s[1] / count - mean * mean, 0.0)   # biased var (BN training)
    # TODO(synk): E[x^2]-E[x]^2 in f32 can cancel for |mean| >> std at very large counts.
    gamma_p = jnp.pad(gamma, (0, CP - Cout))         # padded lanes -> scale=shift=0
    beta_p = jnp.pad(beta, (0, CP - Cout))
    scale = gamma_p / jnp.sqrt(var + 1e-5)
    shift = beta_p - mean * scale
    return scale.reshape(1, CP).astype(jnp.float32), shift.reshape(1, CP).astype(jnp.float32)


def masked_conv_bn_relu_im2col(x_nhwc, lengths, w, gamma, beta, stride, padding):
    """Layer-1 path (Cin=1, small K): full im2col GEMM, single K step."""
    N, H, W, Cin = x_nhwc.shape
    Cout, _, kh, kw = w.shape
    sh, sw = stride
    ph, pw = padding

    Hout = length_narrow(H, kh, sh, ph)
    Wout = length_narrow(W, kw, sw, pw)
    new_lengths = length_narrow(lengths, kw, sw, pw)

    x_bf = x_nhwc.astype(jnp.bfloat16)
    xp = jnp.pad(x_bf, ((0, 0), (ph, ph), (pw, pw), (0, 0)))
    cols = []
    for i in range(kh):
        for j in range(kw):
            cols.append(xp[:, i:i + sh * (Hout - 1) + 1:sh,
                            j:j + sw * (Wout - 1) + 1:sw, :])       # (N, Hout, Wout, Cin)
    patches = jnp.stack(cols, axis=-1).reshape(N * Hout * Wout, Cin * kh * kw)  # bf16
    M, K = patches.shape

    Kp = _round_up(K, 128)
    Mp = _round_up(M, max(TM, BM_BN))
    a = jnp.pad(patches, ((0, Mp - M), (0, Kp - K)))                # bf16 directly
    wmat = w.reshape(Cout, -1).T                                    # (K, Cout), K = (Cin, kh, kw)
    b = jnp.pad(wmat, ((0, Kp - K), (0, CP - Cout))).astype(jnp.bfloat16)

    # Per-row validity mask: masks padded M rows and sequence positions >= new_lengths[n].
    rows = jnp.arange(Mp, dtype=jnp.int32)
    n_idx = jnp.minimum(rows // (Hout * Wout), N - 1)
    w_idx = rows % Wout
    valid = (rows < M) & (w_idx < new_lengths[n_idx])
    rowmask = valid.astype(jnp.float32)[:, None]                    # (Mp, 1)

    ym, stats = conv_gemm_mask_stats(a, b, rowmask, TM)             # Pallas (MXU + epilogue)
    scale, shift = _bn_scale_shift(stats, float(M), gamma, beta, Cout)
    z = bn_relu_flat(ym, scale, shift, BM_BN)                       # Pallas elementwise
    z = z[:M, :Cout].reshape(N, Hout, Wout, Cout)                   # bf16 NHWC
    return z, new_lengths


def masked_conv_bn_relu_stream(x_nhwc, lengths, w, gamma, beta, stride, padding):
    """Layer-2 path: kh-decomposed streamed conv (width-only im2col, 11x instead
    of 231x activation duplication), mask + BN stats fused, then BN+ReLU."""
    N, H, W, Cin = x_nhwc.shape
    Cout, _, kh, kw = w.shape
    sh, sw = stride
    ph, pw = padding

    Hout = length_narrow(H, kh, sh, ph)
    Wout = length_narrow(W, kw, sw, pw)
    new_lengths = length_narrow(lengths, kw, sw, pw)

    x_bf = x_nhwc.astype(jnp.bfloat16)
    xp = jnp.pad(x_bf, ((0, 0), (ph, ph), (pw, pw), (0, 0)))        # (N, Hp, Wp, Cin)
    Hh = Hout + (kh - 1) // sh
    Ckw = kw * Cin

    # Width-only im2col per H-stride phase: phase p holds padded-H rows p, p+sh, ...
    phases = []
    for p in range(sh):
        xph = xp[:, p::sh]                                          # (N, rp, Wp, Cin)
        rp = xph.shape[1]
        xph = jnp.pad(xph, ((0, 0), (0, max(Hh - rp, 0)), (0, 0), (0, 0)))[:, :Hh]
        cols = [xph[:, :, j:j + sw * (Wout - 1) + 1:sw, :] for j in range(kw)]
        xw_p = jnp.stack(cols, axis=3).reshape(N, Hh, Wout, Ckw)    # inner order (kw, Cin)
        phases.append(xw_p)
    xw = jnp.stack(phases, axis=0).reshape(sh * N, Hh, Wout, Ckw)   # bf16

    # Weights per kernel row i: (Ckw, Cout) with matching (kw, Cin) ordering.
    wrows = jnp.transpose(w, (2, 3, 1, 0)).reshape(kh, Ckw, Cout)
    wrows = jnp.pad(wrows, ((0, 0), (0, 0), (0, CP - Cout))).astype(jnp.bfloat16)

    seq = jnp.arange(Wout, dtype=jnp.int32)
    rowmask = (seq[None, :] < new_lengths[:, None]).astype(jnp.float32)[:, :, None]  # (N, Wout, 1)

    y3, stats = conv_stream_kh(xw, wrows, rowmask, N, Hout, Wout, sh)  # Pallas
    M = N * Hout * Wout
    scale, shift = _bn_scale_shift(stats, float(M), gamma, beta, Cout)

    ym = y3.reshape(M, CP)
    Mp = _round_up(M, BM_BN)
    if Mp != M:
        ym = jnp.pad(ym, ((0, Mp - M), (0, 0)))
    z = bn_relu_flat(ym, scale, shift, BM_BN)                       # Pallas elementwise
    z = z[:M, :Cout].reshape(N, Hout, Wout, Cout)                   # bf16 NHWC
    return z, new_lengths


def conv_encoder_forward(x_nchw, lengths, params):
    """x: (Batch, Channel=1, Feature, Sequence); lengths: (Batch,) int32."""
    x = jnp.transpose(x_nchw, (0, 2, 3, 1))                         # NCHW -> NHWC
    x, lengths = masked_conv_bn_relu_im2col(x, lengths, params["w1"], params["g1"],
                                            params["b1"], stride=(2, 2), padding=(20, 5))
    x, lengths = masked_conv_bn_relu_stream(x, lengths, params["w2"], params["g2"],
                                            params["b2"], stride=(2, 1), padding=(10, 5))
    return jnp.transpose(x, (0, 3, 1, 2)).astype(jnp.float32), lengths   # back to NCHW


# TODO(synk): BatchNorm running_mean/running_var buffer updates are an in-place training
# side effect with no influence on the returned tensors; not reproduced here.


# -------------------------- pure-JAX reference -----------------------------

def _ref_layer(x, lengths, w, gamma, beta, stride, padding):
    y = jax.lax.conv_general_dilated(
        x, w, window_strides=stride,
        padding=[(padding[0], padding[0]), (padding[1], padding[1])],
        dimension_numbers=("NCHW", "OIHW", "NCHW"),
        precision=jax.lax.Precision.HIGHEST)
    new_len = length_narrow(lengths, w.shape[3], stride[1], padding[1])
    seq = jnp.arange(y.shape[3])
    keep = seq[None, None, None, :] < new_len[:, None, None, None]
    ym = jnp.where(keep, y, 0.0)
    mean = ym.mean(axis=(0, 2, 3))
    var = ym.var(axis=(0, 2, 3))
    z = (ym - mean[None, :, None, None]) * (gamma / jnp.sqrt(var + 1e-5))[None, :, None, None] \
        + beta[None, :, None, None]
    return jnp.maximum(z, 0.0), new_len


def ref_forward(x, lengths, p):
    x, lengths = _ref_layer(x, lengths, p["w1"], p["g1"], p["b1"], (2, 2), (20, 5))
    x, lengths = _ref_layer(x, lengths, p["w2"], p["g2"], p["b2"], (2, 1), (10, 5))
    return x, lengths


# --------------------------------- main -------------------------------------

if __name__ == "__main__":
    key = jax.random.PRNGKey(0)
    kx, k1, k2, k3, k4, k5, k6 = jax.random.split(key, 7)

    B, F, T = 2, 16, 8
    x = jax.random.normal(kx, (B, 1, F, T), jnp.float32)
    lengths = jnp.array([8, 5], jnp.int32)

    params = {
        # MaskedConv2d(1, 32, kernel=(41, 11), stride=(2, 2), padding=(20, 5), bias=False)
        "w1": jax.random.normal(k1, (32, 1, 41, 11), jnp.float32) / math.sqrt(1 * 41 * 11),
        "g1": 1.0 + 0.1 * jax.random.normal(k2, (32,), jnp.float32),
        "b1": 0.1 * jax.random.normal(k3, (32,), jnp.float32),
        # MaskedConv2d(32, 32, kernel=(21, 11), stride=(2, 1), padding=(10, 5), bias=False)
        "w2": jax.random.normal(k4, (32, 32, 21, 11), jnp.float32) / math.sqrt(32 * 21 * 11),
        "g2": 1.0 + 0.1 * jax.random.normal(k5, (32,), jnp.float32),
        "b2": 0.1 * jax.random.normal(k6, (32,), jnp.float32),
    }

    out, out_len = conv_encoder_forward(x, lengths, params)
    out = jax.block_until_ready(out)
    out_len = jax.block_until_ready(out_len)

    ref_out, ref_len = ref_forward(x, lengths, params)
    assert out.shape == ref_out.shape, (out.shape, ref_out.shape)
    assert np.array_equal(np.asarray(out_len), np.asarray(ref_len))
    np.testing.assert_allclose(np.asarray(out), np.asarray(ref_out), rtol=5e-2, atol=5e-2)

    print("KERNEL_OK")
</pallas_src>

<mosaic_0001>
module attributes {stable_mosaic.version = 11 : i64} {
  func.func @_gemm_mask_stats_kernel(%arg0: i32, %arg1: memref<512x512xbf16, #tpu.memory_space<vmem>>, %arg2: memref<512x128xbf16, #tpu.memory_space<vmem>>, %arg3: memref<512x1xf32, #tpu.memory_space<vmem>>, %arg4: memref<512x128xbf16, #tpu.memory_space<vmem>>, %arg5: memref<1x2x128xf32, #tpu.memory_space<vmem>>) attributes {dimension_semantics = [#tpu.dimension_semantics<parallel>], iteration_bounds = array<i64: 2>, scalar_prefetch = 0 : i64, scratch_operands = 0 : i64, tpu.core_type = #tpu.core_type<tc>, window_params = [{transform_indices = @transform_0, window_bounds = array<i64: 512, 512>}, {pipeline_mode = #tpu.pipeline_mode<synchronous>, transform_indices = @transform_1, window_bounds = array<i64: 512, 128>}, {transform_indices = @transform_2, window_bounds = array<i64: 512, 1>}, {transform_indices = @transform_3, window_bounds = array<i64: 512, 128>}, {transform_indices = @transform_4, window_bounds = array<i64: 1, 2, 128>}]} {
    %c0 = arith.constant 0 : index
    %c0_0 = arith.constant 0 : index
    %0 = vector.load %arg1[%c0, %c0_0] : memref<512x512xbf16, #tpu.memory_space<vmem>>, vector<512x512xbf16>
    %c0_1 = arith.constant 0 : index
    %c0_2 = arith.constant 0 : index
    %1 = vector.load %arg2[%c0_1, %c0_2] : memref<512x128xbf16, #tpu.memory_space<vmem>>, vector<512x128xbf16>
    %cst = arith.constant dense<0.000000e+00> : vector<512x128xf32>
    %2 = tpu.matmul %0, %1, %cst {dimension_numbers = #tpu.dot_dimension_numbers<[1], [0], [0], [1], [0, 0, 1, 1], [], []>} : vector<512x512xbf16>, vector<512x128xbf16>, vector<512x128xf32> -> vector<512x128xf32>
    %c0_3 = arith.constant 0 : index
    %c0_4 = arith.constant 0 : index
    %3 = vector.load %arg3[%c0_3, %c0_4] : memref<512x1xf32, #tpu.memory_space<vmem>>, vector<512x1xf32>
    %4 = vector.broadcast %3 : vector<512x1xf32> to vector<512x128xf32>
    %5 = arith.mulf %2, %4 : vector<512x128xf32>
    %6 = arith.truncf %5 : vector<512x128xf32> to vector<512x128xbf16>
    %c0_5 = arith.constant 0 : index
    %c0_6 = arith.constant 0 : index
    %7 = vector.load %arg4[%c0_5, %c0_6] : memref<512x128xbf16, #tpu.memory_space<vmem>>, vector<512x128xbf16>
    tpu.vector_store %arg4[%c0_5, %c0_6], %6 {strides = array<i32>} : memref<512x128xbf16, #tpu.memory_space<vmem>>, vector<512x128xbf16>,
    %cst_7 = arith.constant dense<0.000000e+00> : vector<128xf32>
    %8 = vector.multi_reduction <add>, %5, %cst_7 [0] : vector<512x128xf32> to vector<128xf32>
    %9 = vector.shape_cast %8 : vector<128xf32> to vector<1x128xf32>
    %c0_8 = arith.constant 0 : index
    %c0_9 = arith.constant 0 : index
    %c0_10 = arith.constant 0 : index
    %10 = vector.load %arg5[%c0_8, %c0_9, %c0_10] : memref<1x2x128xf32, #tpu.memory_space<vmem>>, vector<1x1x128xf32>
    %11 = vector.shape_cast %10 : vector<1x1x128xf32> to vector<1x128xf32>
    %12 = vector.shape_cast %9 : vector<1x128xf32> to vector<1x1x128xf32>
    tpu.vector_store %arg5[%c0_8, %c0_9, %c0_10], %12 {strides = array<i32>} : memref<1x2x128xf32, #tpu.memory_space<vmem>>, vector<1x1x128xf32>,
    %13 = arith.mulf %5, %5 : vector<512x128xf32>
    %cst_11 = arith.constant dense<0.000000e+00> : vector<128xf32>
    %14 = vector.multi_reduction <add>, %13, %cst_11 [0] : vector<512x128xf32> to vector<128xf32>
    %15 = vector.shape_cast %14 : vector<128xf32> to vector<1x128xf32>
    %c0_12 = arith.constant 0 : index
    %c1 = arith.constant 1 : index
    %c0_13 = arith.constant 0 : index
    %16 = vector.load %arg5[%c0_12, %c1, %c0_13] : memref<1x2x128xf32, #tpu.memory_space<vmem>>, vector<1x1x128xf32>
    %17 = vector.shape_cast %16 : vector<1x1x128xf32> to vector<1x128xf32>
    %18 = vector.shape_cast %15 : vector<1x128xf32> to vector<1x1x128xf32>
    tpu.vector_store %arg5[%c0_12, %c1, %c0_13], %18 {strides = array<i32>} : memref<1x2x128xf32, #tpu.memory_space<vmem>>, vector<1x1x128xf32>,
    return
  }
  func.func @transform_0(%arg0: i32) -> (i32, i32) {
    %c0_i32 = arith.constant 0 : i32
    %c0_i32_0 = arith.constant 0 : i32
    return %arg0, %c0_i32 : i32, i32
  }
  func.func @transform_1(%arg0: i32) -> (i32, i32) {
    %c0_i32 = arith.constant 0 : i32
    %c0_i32_0 = arith.constant 0 : i32
    %c0_i32_1 = arith.constant 0 : i32
    return %c0_i32, %c0_i32_0 : i32, i32
  }
  func.func @transform_2(%arg0: i32) -> (i32, i32) {
    %c0_i32 = arith.constant 0 : i32
    %c0_i32_0 = arith.constant 0 : i32
    return %arg0, %c0_i32 : i32, i32
  }
  func.func @transform_3(%arg0: i32) -> (i32, i32) {
    %c0_i32 = arith.constant 0 : i32
    %c0_i32_0 = arith.constant 0 : i32
    return %arg0, %c0_i32 : i32, i32
  }
  func.func @transform_4(%arg0: i32) -> (i32, i32, i32) {
    %c0_i32 = arith.constant 0 : i32
    %c0_i32_0 = arith.constant 0 : i32
    %c0_i32_1 = arith.constant 0 : i32
    return %arg0, %c0_i32, %c0_i32_0 : i32, i32, i32
  }
}

</mosaic_0001>

<llo_original>
// kernel: tpu_custom_call.1
$region0: #{tpu_custom_call.1}
  #allocation0 [shape = 'u32[]', space=smem, size = 0x4, offset = 0x4, fixed_abs, tag = 'smem constant byte address 0x4 - core index']
  #allocation1 [shape = 'u32[72,128]{1,0:T(1,128)}', space=vmem, size = 0x9000, scoped, tag = 'internal scratch']
  %s0 = inlined_call_operand.hbm [shape: bf16[1024,512], index: 0, kind: input, shape index: {}]
  %s1 = inlined_call_operand.vmem [shape: bf16[512,128], index: 1, kind: input, shape index: {}]
  %s2 = inlined_call_operand.vmem [shape: f32[1024,1], index: 2, kind: input, shape index: {}]
  %s3 = inlined_call_operand.hbm [shape: bf16[1024,128], index: 3, kind: output, shape index: {0}]
  %s4 = inlined_call_operand.hbm [shape: f32[2,2,128], index: 4, kind: output, shape index: {1}]
  %5 = xla_tuple %s3, %s4
  %s6 = sld [smem:[#allocation0]]
  $region57: #{tpu_custom_call.1} parent=0
    _
  %s8 = ssub.s32 1, %s6
  %s9 = scalar_select 0, %s8, %s6
  $region1: #{tpu_custom_call.1} parent=0
    #allocation2 [shape = 'u8[1048576]{0}', space=vmem, size = 0x100000, scoped, tag = 'input window, operand 0']
    #allocation3 [shape = 's32[2]{0}', space=sflag, size = 0x8, scoped, tag = 'scoped memory for tpu_custom_call.1']
    #allocation4 [shape = 's32[2]{0}', space=sflag, size = 0x8, scoped, tag = 'scoped memory for tpu_custom_call.1']
    #allocation5 [shape = 'u8[262144]{0}', space=vmem, size = 0x40000, scoped, tag = 'output window, operand 0']
    #allocation6 [shape = 'u8[2048]{0}', space=vmem, size = 0x800, scoped, tag = 'output window, operand 1']
    #allocation7 [shape = 's32[2]{0}', space=sflag, size = 0x8, scoped, tag = 'scoped memory for tpu_custom_call.1']
    %10 = vsyncpa [#allocation3], 0
    %s11 = scalar_lea.sflag [#allocation3], 1
    %12 = vsyncpa %s11, 0
    %13 = vsyncpa [#allocation4], 0
    %s14 = scalar_lea.sflag [#allocation4], 1
    %15 = vsyncpa %s14, 0
    %16 = vsyncpa [#allocation7], 0
    %s17 = scalar_lea.sflag [#allocation7], 1
    %18 = vsyncpa %s17, 0
    loop: start=0, step=1, limit=4
    $region2: #{tpu_custom_call.1} parent=1 // loop_pre_header
      _
    $region3: #{tpu_custom_call.1} parent=1 // loop_header
      %s20 = sphi 0, %s24
      %p21 = scmp.ge.s32.totalorder %s20, 4
      %s30 = sphi 0, %s32
      %s33 = sphi 0, %s30
      %s34 = sphi 0, %s33
      %s50 = sphi 0, %s34
      %s54 = sphi 0, %s54
      %s56 = sphi 0, %s54
      %s57 = sphi 0, %s56
      %s71 = sphi 0, %s57
      %s77 = sphi 0, %s79
      %s80 = sphi 0, %s77
      %s81 = sphi 0, %s80
      %s97 = sphi 0, %s81
      %s103 = sphi 0, %s105
      %s106 = sphi 0, %s103
      %s107 = sphi 0, %s106
      %s123 = sphi 0, %s107
      %s129 = sphi 0, %s131
      %s132 = sphi 0, %s129
      %s133 = sphi 0, %s132
      %s149 = sphi 0, %s133
    $region4: #{tpu_custom_call.1} parent=1 // loop_header_branch
      %23 = sbr.rel (%p21) target = $region8
    $region5: #{tpu_custom_call.1} parent=1 // loop_body
      %s25 = ssub.s32 %s20, 1
      %s26 = ssub.s32 %s20, 2
      %s27 = sadd.s32 %s20, 1
      %s28 = ssub.s32 %s20, %s27
      %p29 = scmp.eq.s32.totalorder %s28, 0
      %s31 = sadd.s32 %s30, 1
      %s32 = scalar_select %p29, %s30, %s31
      %p35 = pneg %p29
      %p36 = scmp.eq.s32.totalorder %s20, 1
      %p37 = por %p35, %p36
      %p38 = scmp.ne.s32.totalorder %s30, %s33
      %p39 = scmp.eq.s32.totalorder %s20, 0
      %p40 = por %p38, %p39
      %p41 = scmp.ne.s32.totalorder %s30, %s33
      %p42 = scmp.eq.s32.totalorder %s25, 1
      %p43 = por %p41, %p42
      %p44 = scmp.ne.s32.totalorder %s33, %s34
      %p45 = scmp.eq.s32.totalorder %s25, 0
      %p46 = por %p44, %p45
      %p47 = scmp.ne.s32.totalorder %s33, %s34
      %p48 = scmp.eq.s32.totalorder %s26, 1
      %p49 = por %p47, %p48
      %p51 = scmp.ne.s32.totalorder %s34, %s50
      %p52 = scmp.eq.s32.totalorder %s26, 0
      %p53 = por %p51, %p52
      %s55 = sadd.s32 %s54, 1
      %p58 = scmp.eq.s32.totalorder %s20, 1
      %p59 = scmp.ne.s32.totalorder %s54, %s56
      %p60 = scmp.eq.s32.totalorder %s20, 0
      %p61 = por %p59, %p60
      %p62 = scmp.ne.s32.totalorder %s54, %s56
      %p63 = scmp.eq.s32.totalorder %s25, 1
      %p64 = por %p62, %p63
      %p65 = scmp.ne.s32.totalorder %s56, %s57
      %p66 = scmp.eq.s32.totalorder %s25, 0
      %p67 = por %p65, %p66
      %p68 = scmp.ne.s32.totalorder %s56, %s57
      %p69 = scmp.eq.s32.totalorder %s26, 1
      %p70 = por %p68, %p69
      %p72 = scmp.ne.s32.totalorder %s57, %s71
      %p73 = scmp.eq.s32.totalorder %s26, 0
      %p74 = por %p72, %p73
      %s75 = ssub.s32 %s20, %s27
      %p76 = scmp.eq.s32.totalorder %s75, 0
      %s78 = sadd.s32 %s77, 1
      %s79 = scalar_select %p76, %s77, %s78
      %p82 = pneg %p76
      %p83 = scmp.eq.s32.totalorder %s20, 1
      %p84 = por %p82, %p83
      %p85 = scmp.ne.s32.totalorder %s77, %s80
      %p86 = scmp.eq.s32.totalorder %s20, 0
      %p87 = por %p85, %p86
      %p88 = scmp.ne.s32.totalorder %s77, %s80
      %p89 = scmp.eq.s32.totalorder %s25, 1
      %p90 = por %p88, %p89
      %p91 = scmp.ne.s32.totalorder %s80, %s81
      %p92 = scmp.eq.s32.totalorder %s25, 0
      %p93 = por %p91, %p92
      %p94 = scmp.ne.s32.totalorder %s80, %s81
      %p95 = scmp.eq.s32.totalorder %s26, 1
      %p96 = por %p94, %p95
      %p98 = scmp.ne.s32.totalorder %s81, %s97
      %p99 = scmp.eq.s32.totalorder %s26, 0
      %p100 = por %p98, %p99
      %s101 = ssub.s32 %s20, %s27
      %p102 = scmp.eq.s32.totalorder %s101, 0
      %s104 = sadd.s32 %s103, 1
      %s105 = scalar_select %p102, %s103, %s104
      %p108 = pneg %p102
      %p109 = scmp.eq.s32.totalorder %s20, 1
      %p110 = por %p108, %p109
      %p111 = scmp.ne.s32.totalorder %s103, %s106
      %p112 = scmp.eq.s32.totalorder %s20, 0
      %p113 = por %p111, %p112
      %p114 = scmp.ne.s32.totalorder %s103, %s106
      %p115 = scmp.eq.s32.totalorder %s25, 1
      %p116 = por %p114, %p115
      %p117 = scmp.ne.s32.totalorder %s106, %s107
      %p118 = scmp.eq.s32.totalorder %s25, 0
      %p119 = por %p117, %p118
      %p120 = scmp.ne.s32.totalorder %s106, %s107
      %p121 = scmp.eq.s32.totalorder %s26, 1
      %p122 = por %p120, %p121
      %p124 = scmp.ne.s32.totalorder %s107, %s123
      %p125 = scmp.eq.s32.totalorder %s26, 0
      %p126 = por %p124, %p125
      %s127 = ssub.s32 %s20, %s27
      %p128 = scmp.eq.s32.totalorder %s127, 0
      %s130 = sadd.s32 %s129, 1
      %s131 = scalar_select %p128, %s129, %s130
      %p134 = pneg %p128
      %p135 = scmp.eq.s32.totalorder %s20, 1
      %p136 = por %p134, %p135
      %p137 = scmp.ne.s32.totalorder %s129, %s132
      %p138 = scmp.eq.s32.totalorder %s20, 0
      %p139 = por %p137, %p138
      %p140 = scmp.ne.s32.totalorder %s129, %s132
      %p141 = scmp.eq.s32.totalorder %s25, 1
      %p142 = por %p140, %p141
      %p143 = scmp.ne.s32.totalorder %s132, %s133
      %p144 = scmp.eq.s32.totalorder %s25, 0
      %p145 = por %p143, %p144
      %p146 = scmp.ne.s32.totalorder %s132, %s133
      %p147 = scmp.eq.s32.totalorder %s26, 1
      %p148 = por %p146, %p147
      %p150 = scmp.ne.s32.totalorder %s133, %s149
      %p151 = scmp.eq.s32.totalorder %s26, 0
      %p152 = por %p150, %p151
      %p153 = scmp.le.s32.totalorder 1, %s20
      %p154 = scmp.lt.s32.totalorder %s20, 3
      %p155 = pnand %p153, %p154
      %p156 = pneg %p155
      // Predicated region
      $region9: #{tpu_custom_call.1} parent=5 // pred_check
        _
      $region10: #{tpu_custom_call.1} parent=5 // pred_check_branch
        %158 = sbr.rel (%p155) target = $region12
      $region11: #{tpu_custom_call.1} parent=5 // pred_region
        %s159 = ssub.s32 %s20, 1
        // Predicated region
        $region13: #{tpu_custom_call.1} parent=11 // pred_check
          %p160 = pneg %p67
        $region14: #{tpu_custom_call.1} parent=11 // pred_check_branch
          %162 = sbr.rel (%p160) target = $region16
        $region15: #{tpu_custom_call.1} parent=11 // pred_region
          _
        $region16: #{tpu_custom_call.1} parent=11 // pred_fallthru
          _
      $region12: #{tpu_custom_call.1} parent=5 // pred_fallthru
        _
      %p163 = scmp.lt.s32.totalorder %s20, 2
      // Predicated region
      $region17: #{tpu_custom_call.1} parent=5 // pred_check
        %p164 = pneg %p163
      $region18: #{tpu_custom_call.1} parent=5 // pred_check_branch
        %166 = sbr.rel (%p164) target = $region20
      $region19: #{tpu_custom_call.1} parent=5 // pred_region
        // Predicated region
        $region21: #{tpu_custom_call.1} parent=19 // pred_check
          %p167 = pneg %p40
        $region22: #{tpu_custom_call.1} parent=19 // pred_check_branch
          %169 = sbr.rel (%p167) target = $region24
        $region23: #{tpu_custom_call.1} parent=19 // pred_region
          %s170 = sand.u32 %s30, 1
          %s171 = scalar_lea.sflag [#allocation3], %s170
          %s172 = sand.u32 %s30, 1
          %s173 = smul.addr %s172, 1024
          %s174 = scalar_lea.vmem [#allocation2], %s173
          %s175 = smul.u32 64, %s20
          %177 = vsyncadd %s171, 0
          %s178 = smul.addr %s175, 4
          %s179 = smul.addr %s178, 4
          %s180 = scalar_lea.hbm %s0, %s179
          %s181 = sshll.u32 %s180, 4
          %s182 = int_to_ptr.hbm [resolvable:$true] %s181
          %s183 = sshll.u32 %s174, 4
          %s184 = int_to_ptr.vmem [resolvable:$true] %s183
          %189 = dma.hbm_to_vmem [thread:$0]  %s182, 16384, %s184, %s171, 256, 256, 16
        $region24: #{tpu_custom_call.1} parent=19 // pred_fallthru
          _
        // Predicated region
        $region25: #{tpu_custom_call.1} parent=19 // pred_check
          %p190 = pneg %p87
        $region26: #{tpu_custom_call.1} parent=19 // pred_check_branch
          %192 = sbr.rel (%p190) target = $region28
        $region27: #{tpu_custom_call.1} parent=19 // pred_region
          %s193 = smul.u32 64, %s20
          %p194 = scmp.lt.s32.totalorder %s193, 127
          %s195 = scalar_select %p194, %s193, 127
          %s196 = smul.addr %s195, 8
          %s197 = scalar_lea.vmem %s2, %s196
          %s198 = smul.u32 64, %s20
        $region28: #{tpu_custom_call.1} parent=19 // pred_fallthru
          _
      $region20: #{tpu_custom_call.1} parent=5 // pred_fallthru
        _
      %p199 = scmp.le.s32.totalorder 1, %s20
      %p200 = scmp.lt.s32.totalorder %s20, 3
      %p201 = pnand %p199, %p200
      %p202 = pneg %p201
      // Predicated region
      $region29: #{tpu_custom_call.1} parent=5 // pred_check
        _
      $region30: #{tpu_custom_call.1} parent=5 // pred_check_branch
        %204 = sbr.rel (%p201) target = $region32
      $region31: #{tpu_custom_call.1} parent=5 // pred_region
        %s205 = ssub.s32 %s20, 1
        %s206 = sand.u32 %s33, 1
        %s207 = scalar_lea.sflag [#allocation3], %s206
        %s208 = sand.u32 %s33, 1
        %s209 = smul.addr %s208, 1024
        %s210 = scalar_lea.vmem [#allocation2], %s209
        // Predicated region
        $region33: #{tpu_custom_call.1} parent=31 // pred_check
          %p211 = pneg %p46
        $region34: #{tpu_custom_call.1} parent=31 // pred_check_branch
          %213 = sbr.rel (%p211) target = $region36
        $region35: #{tpu_custom_call.1} parent=31 // pred_region
          %215 = dma.done %s207, 16384
        $region36: #{tpu_custom_call.1} parent=31 // pred_fallthru
          _
        %s216 = sand.u32 %s33, 1
        %s217 = scalar_lea.sflag [#allocation3], %s216
        %s218 = sand.u32 %s33, 1
        %s219 = smul.addr %s218, 1024
        %s220 = scalar_lea.vmem [#allocation2], %s219
        %p221 = pneg %p46
        %p222 = pneg %p43
        %p223 = pneg %p67
        %p224 = pneg %p64
        %s225 = smul.u32 64, %s25
        %p226 = scmp.lt.s32.totalorder %s225, 127
        %s227 = scalar_select %p226, %s225, 127
        %s228 = smul.addr %s227, 8
        %s229 = scalar_lea.vmem %s2, %s228
        %p230 = pneg %p93
        %p231 = pneg %p90
        %p232 = pneg %p119
        %p233 = pneg %p116
        %s234 = sand.u32 %s106, 1
        %s235 = scalar_lea.sflag [#allocation4], %s234
        %s236 = sand.u32 %s106, 1
        %s237 = smul.addr %s236, 256
        %s238 = scalar_lea.vmem [#allocation5], %s237
        %p239 = pneg %p145
        %p240 = pneg %p142
        %s241 = sand.u32 %s132, 1
        %s242 = scalar_lea.sflag [#allocation7], %s241
        %s243 = sand.u32 %s132, 1
        %s244 = smul.addr %s243, 2
        %s245 = scalar_lea.vmem [#allocation6], %s244
        %s246 = smul.u32 64, %s25
        %s247 = smul.u32 64, %s25
        %p248 = scmp.lt.s32.totalorder %s247, 127
        %s249 = scalar_select %p248, %s247, 127
        %s250 = smul.addr %s249, 8
        %s251 = scalar_lea.vmem %s2, %s250
        %s252 = smul.u32 64, %s25
        %s253 = smul.u32 64, %s25
        %v254 = vld [vmem:[%s210] sm:$0xff]
        %v255 = vld [vmem:[%s210 + $0x8] sm:$0xff]
        %v256 = vld [vmem:[%s210 + $0x10] sm:$0xff]
        %v257 = vld [vmem:[%s210 + $0x18] sm:$0xff]
        %v258 = vld [vmem:[%s210 + $0x20] sm:$0xff]
        %v259 = vld [vmem:[%s210 + $0x28] sm:$0xff]
        %v260 = vld [vmem:[%s210 + $0x30] sm:$0xff]
        %v261 = vld [vmem:[%s210 + $0x38] sm:$0xff]
        %v262 = vld [vmem:[%s210 + $0x40] sm:$0xff]
        %v263 = vld [vmem:[%s210 + $0x48] sm:$0xff]
        %v264 = vld [vmem:[%s210 + $0x50] sm:$0xff]
        %v265 = vld [vmem:[%s210 + $0x58] sm:$0xff]
        %v266 = vld [vmem:[%s210 + $0x60] sm:$0xff]
        %v267 = vld [vmem:[%s210 + $0x68] sm:$0xff]
        %v268 = vld [vmem:[%s210 + $0x70] sm:$0xff]
        %v269 = vld [vmem:[%s210 + $0x78] sm:$0xff]
        %v270 = vld [vmem:[%s210 + $0x80] sm:$0xff]
        %v271 = vld [vmem:[%s210 + $0x88] sm:$0xff]
        %v272 = vld [vmem:[%s210 + $0x90] sm:$0xff]
        %v273 = vld [vmem:[%s210 + $0x98] sm:$0xff]
        %v274 = vld [vmem:[%s210 + $0xa0] sm:$0xff]
        %v275 = vld [vmem:[%s210 + $0xa8] sm:$0xff]
        %v276 = vld [vmem:[%s210 + $0xb0] sm:$0xff]
        %v277 = vld [vmem:[%s210 + $0xb8] sm:$0xff]
        %v278 = vld [vmem:[%s210 + $0xc0] sm:$0xff]
        %v279 = vld [vmem:[%s210 + $0xc8] sm:$0xff]
        %v280 = vld [vmem:[%s210 + $0xd0] sm:$0xff]
        %v281 = vld [vmem:[%s210 + $0xd8] sm:$0xff]
        %v282 = vld [vmem:[%s210 + $0xe0] sm:$0xff]
        %v283 = vld [vmem:[%s210 + $0xe8] sm:$0xff]
        %v284 = vld [vmem:[%s210 + $0xf0] sm:$0xff]
        %v285 = vld [vmem:[%s210 + $0xf8] sm:$0xff]
        %v286 = vld [vmem:[%s210 + $0x100] sm:$0xff]
        %v287 = vld [vmem:[%s210 + $0x108] sm:$0xff]
        %v288 = vld [vmem:[%s210 + $0x110] sm:$0xff]
        %v289 = vld [vmem:[%s210 + $0x118] sm:$0xff]
        %v290 = vld [vmem:[%s210 + $0x120] sm:$0xff]
        %v291 = vld [vmem:[%s210 + $0x128] sm:$0xff]
        %v292 = vld [vmem:[%s210 + $0x130] sm:$0xff]
        %v293 = vld [vmem:[%s210 + $0x138] sm:$0xff]
        %v294 = vld [vmem:[%s210 + $0x140] sm:$0xff]
        %v295 = vld [vmem:[%s210 + $0x148] sm:$0xff]
        %v296 = vld [vmem:[%s210 + $0x150] sm:$0xff]
        %v297 = vld [vmem:[%s210 + $0x158] sm:$0xff]
        %v298 = vld [vmem:[%s210 + $0x160] sm:$0xff]
        %v299 = vld [vmem:[%s210 + $0x168] sm:$0xff]
        %v300 = vld [vmem:[%s210 + $0x170] sm:$0xff]
        %v301 = vld [vmem:[%s210 + $0x178] sm:$0xff]
        %v302 = vld [vmem:[%s210 + $0x180] sm:$0xff]
        %v303 = vld [vmem:[%s210 + $0x188] sm:$0xff]
        %v304 = vld [vmem:[%s210 + $0x190] sm:$0xff]
        %v305 = vld [vmem:[%s210 + $0x198] sm:$0xff]
        %v306 = vld [vmem:[%s210 + $0x1a0] sm:$0xff]
        %v307 = vld [vmem:[%s210 + $0x1a8] sm:$0xff]
        %v308 = vld [vmem:[%s210 + $0x1b0] sm:$0xff]
        %v309 = vld [vmem:[%s210 + $0x1b8] sm:$0xff]
        %v310 = vld [vmem:[%s210 + $0x1c0] sm:$0xff]
        %v311 = vld [vmem:[%s210 + $0x1c8] sm:$0xff]
        %v312 = vld [vmem:[%s210 + $0x1d0] sm:$0xff]
        %v313 = vld [vmem:[%s210 + $0x1d8] sm:$0xff]
        %v314 = vld [vmem:[%s210 + $0x1e0] sm:$0xff]
        %v315 = vld [vmem:[%s210 + $0x1e8] sm:$0xff]
        %v316 = vld [vmem:[%s210 + $0x1f0] sm:$0xff]
        %v317 = vld [vmem:[%s210 + $0x1f8] sm:$0xff]
        %v318 = vld [vmem:[%s210 + $0x200] sm:$0xff]
        %v319 = vld [vmem:[%s210 + $0x208] sm:$0xff]
        %v320 = vld [vmem:[%s210 + $0x210] sm:$0xff]
        %v321 = vld [vmem:[%s210 + $0x218] sm:$0xff]
        %v322 = vld [vmem:[%s210 + $0x220] sm:$0xff]
        %v323 = vld [vmem:[%s210 + $0x228] sm:$0xff]
        %v324 = vld [vmem:[%s210 + $0x230] sm:$0xff]
        %v325 = vld [vmem:[%s210 + $0x238] sm:$0xff]
        %v326 = vld [vmem:[%s210 + $0x240] sm:$0xff]
        %v327 = vld [vmem:[%s210 + $0x248] sm:$0xff]
        %v328 = vld [vmem:[%s210 + $0x250] sm:$0xff]
        %v329 = vld [vmem:[%s210 + $0x258] sm:$0xff]
        %v330 = vld [vmem:[%s210 + $0x260] sm:$0xff]
        %v331 = vld [vmem:[%s210 + $0x268] sm:$0xff]
        %v332 = vld [vmem:[%s210 + $0x270] sm:$0xff]
        %v333 = vld [vmem:[%s210 + $0x278] sm:$0xff]
        %v334 = vld [vmem:[%s210 + $0x280] sm:$0xff]
        %v335 = vld [vmem:[%s210 + $0x288] sm:$0xff]
        %v336 = vld [vmem:[%s210 + $0x290] sm:$0xff]
        %v337 = vld [vmem:[%s210 + $0x298] sm:$0xff]
        %v338 = vld [vmem:[%s210 + $0x2a0] sm:$0xff]
        %v339 = vld [vmem:[%s210 + $0x2a8] sm:$0xff]
        %v340 = vld [vmem:[%s210 + $0x2b0] sm:$0xff]
        %v341 = vld [vmem:[%s210 + $0x2b8] sm:$0xff]
        %v342 = vld [vmem:[%s210 + $0x2c0] sm:$0xff]
        %v343 = vld [vmem:[%s210 + $0x2c8] sm:$0xff]
        %v344 = vld [vmem:[%s210 + $0x2d0] sm:$0xff]
        %v345 = vld [vmem:[%s210 + $0x2d8] sm:$0xff]
        %v346 = vld [vmem:[%s210 + $0x2e0] sm:$0xff]
        %v347 = vld [vmem:[%s210 + $0x2e8] sm:$0xff]
        %v348 = vld [vmem:[%s210 + $0x2f0] sm:$0xff]
        %v349 = vld [vmem:[%s210 + $0x2f8] sm:$0xff]
        %v350 = vld [vmem:[%s210 + $0x300] sm:$0xff]
        %v351 = vld [vmem:[%s210 + $0x308] sm:$0xff]
        %v352 = vld [vmem:[%s210 + $0x310] sm:$0xff]
        %v353 = vld [vmem:[%s210 + $0x318] sm:$0xff]
        %v354 = vld [vmem:[%s210 + $0x320] sm:$0xff]
        %v355 = vld [vmem:[%s210 + $0x328] sm:$0xff]
        %v356 = vld [vmem:[%s210 + $0x330] sm:$0xff]
        %v357 = vld [vmem:[%s210 + $0x338] sm:$0xff]
        %v358 = vld [vmem:[%s210 + $0x340] sm:$0xff]
        %v359 = vld [vmem:[%s210 + $0x348] sm:$0xff]
        %v360 = vld [vmem:[%s210 + $0x350] sm:$0xff]
        %v361 = vld [vmem:[%s210 + $0x358] sm:$0xff]
        %v362 = vld [vmem:[%s210 + $0x360] sm:$0xff]
        %v363 = vld [vmem:[%s210 + $0x368] sm:$0xff]
        %v364 = vld [vmem:[%s210 + $0x370] sm:$0xff]
        %v365 = vld [vmem:[%s210 + $0x378] sm:$0xff]
        %v366 = vld [vmem:[%s210 + $0x380] sm:$0xff]
        %v367 = vld [vmem:[%s210 + $0x388] sm:$0xff]
        %v368 = vld [vmem:[%s210 + $0x390] sm:$0xff]
        %v369 = vld [vmem:[%s210 + $0x398] sm:$0xff]
        %v370 = vld [vmem:[%s210 + $0x3a0] sm:$0xff]
        %v371 = vld [vmem:[%s210 + $0x3a8] sm:$0xff]
        %v372 = vld [vmem:[%s210 + $0x3b0] sm:$0xff]
        %v373 = vld [vmem:[%s210 + $0x3b8] sm:$0xff]
        %v374 = vld [vmem:[%s210 + $0x3c0] sm:$0xff]
        %v375 = vld [vmem:[%s210 + $0x3c8] sm:$0xff]
        %v376 = vld [vmem:[%s210 + $0x3d0] sm:$0xff]
        %v377 = vld [vmem:[%s210 + $0x3d8] sm:$0xff]
        %v378 = vld [vmem:[%s210 + $0x3e0] sm:$0xff]
        %v379 = vld [vmem:[%s210 + $0x3e8] sm:$0xff]
        %v380 = vld [vmem:[%s210 + $0x3f0] sm:$0xff]
        %v381 = vld [vmem:[%s210 + $0x3f8] sm:$0xff]
        %v382 = vld [vmem:[%s1] sm:$0xf]
        %v383 = vld [vmem:[%s1 + $0x4] sm:$0xf]
        %v384 = vld [vmem:[%s1 + $0x8] sm:$0xf]
        %v385 = vld [vmem:[%s1 + $0xc] sm:$0xf]
        %v386 = vld [vmem:[%s1 + $0x10] sm:$0xf]
        %v387 = vld [vmem:[%s1 + $0x14] sm:$0xf]
        %v388 = vld [vmem:[%s1 + $0x18] sm:$0xf]
        %v389 = vld [vmem:[%s1 + $0x1c] sm:$0xf]
        %v390 = vld [vmem:[%s1 + $0x20] sm:$0xf]
        %v391 = vld [vmem:[%s1 + $0x24] sm:$0xf]
        %v392 = vld [vmem:[%s1 + $0x28] sm:$0xf]
        %v393 = vld [vmem:[%s1 + $0x2c] sm:$0xf]
        %v394 = vld [vmem:[%s1 + $0x30] sm:$0xf]
        %v395 = vld [vmem:[%s1 + $0x34] sm:$0xf]
        %v396 = vld [vmem:[%s1 + $0x38] sm:$0xf]
        %v397 = vld [vmem:[%s1 + $0x3c] sm:$0xf]
        %v398 = vld [vmem:[%s1 + $0x40] sm:$0xf]
        %v399 = vld [vmem:[%s1 + $0x44] sm:$0xf]
        %v400 = vld [vmem:[%s1 + $0x48] sm:$0xf]
        %v401 = vld [vmem:[%s1 + $0x4c] sm:$0xf]
        %v402 = vld [vmem:[%s1 + $0x50] sm:$0xf]
        %v403 = vld [vmem:[%s1 + $0x54] sm:$0xf]
        %v404 = vld [vmem:[%s1 + $0x58] sm:$0xf]
        %v405 = vld [vmem:[%s1 + $0x5c] sm:$0xf]
        %v406 = vld [vmem:[%s1 + $0x60] sm:$0xf]
        %v407 = vld [vmem:[%s1 + $0x64] sm:$0xf]
        %v408 = vld [vmem:[%s1 + $0x68] sm:$0xf]
        %v409 = vld [vmem:[%s1 + $0x6c] sm:$0xf]
        %v410 = vld [vmem:[%s1 + $0x70] sm:$0xf]
        %v411 = vld [vmem:[%s1 + $0x74] sm:$0xf]
        %v412 = vld [vmem:[%s1 + $0x78] sm:$0xf]
        %v413 = vld [vmem:[%s1 + $0x7c] sm:$0xf]
        %v414 = vld [vmem:[%s1 + $0x80] sm:$0xf]
        %v415 = vld [vmem:[%s1 + $0x84] sm:$0xf]
        %v416 = vld [vmem:[%s1 + $0x88] sm:$0xf]
        %v417 = vld [vmem:[%s1 + $0x8c] sm:$0xf]
        %v418 = vld [vmem:[%s1 + $0x90] sm:$0xf]
        %v419 = vld [vmem:[%s1 + $0x94] sm:$0xf]
        %v420 = vld [vmem:[%s1 + $0x98] sm:$0xf]
        %v421 = vld [vmem:[%s1 + $0x9c] sm:$0xf]
        %v422 = vld [vmem:[%s1 + $0xa0] sm:$0xf]
        %v423 = vld [vmem:[%s1 + $0xa4] sm:$0xf]
        %v424 = vld [vmem:[%s1 + $0xa8] sm:$0xf]
        %v425 = vld [vmem:[%s1 + $0xac] sm:$0xf]
        %v426 = vld [vmem:[%s1 + $0xb0] sm:$0xf]
        %v427 = vld [vmem:[%s1 + $0xb4] sm:$0xf]
        %v428 = vld [vmem:[%s1 + $0xb8] sm:$0xf]
        %v429 = vld [vmem:[%s1 + $0xbc] sm:$0xf]
        %v430 = vld [vmem:[%s1 + $0xc0] sm:$0xf]
        %v431 = vld [vmem:[%s1 + $0xc4] sm:$0xf]
        %v432 = vld [vmem:[%s1 + $0xc8] sm:$0xf]
        %v433 = vld [vmem:[%s1 + $0xcc] sm:$0xf]
        %v434 = vld [vmem:[%s1 + $0xd0] sm:$0xf]
        %v435 = vld [vmem:[%s1 + $0xd4] sm:$0xf]
        %v436 = vld [vmem:[%s1 + $0xd8] sm:$0xf]
        %v437 = vld [vmem:[%s1 + $0xdc] sm:$0xf]
        %v438 = vld [vmem:[%s1 + $0xe0] sm:$0xf]
        %v439 = vld [vmem:[%s1 + $0xe4] sm:$0xf]
        %v440 = vld [vmem:[%s1 + $0xe8] sm:$0xf]
        %v441 = vld [vmem:[%s1 + $0xec] sm:$0xf]
        %v442 = vld [vmem:[%s1 + $0xf0] sm:$0xf]
        %v443 = vld [vmem:[%s1 + $0xf4] sm:$0xf]
        %v444 = vld [vmem:[%s1 + $0xf8] sm:$0xf]
        %v445 = vld [vmem:[%s1 + $0xfc] sm:$0xf]
        %v574 = vunpack.c.l.b16 %v254
        %v575 = vunpack.c.h.b16 %v254
        %v576 = vunpack.c.l.b16 %v255
        %v577 = vunpack.c.h.b16 %v255
        %v578 = vunpack.c.l.b16 %v256
        %v579 = vunpack.c.h.b16 %v256
        %v580 = vunpack.c.l.b16 %v257
        %v581 = vunpack.c.h.b16 %v257
        %v582 = vunpack.c.l.b16 %v258
        %v583 = vunpack.c.h.b16 %v258
        %v584 = vunpack.c.l.b16 %v259
        %v585 = vunpack.c.h.b16 %v259
        %v586 = vunpack.c.l.b16 %v260
        %v587 = vunpack.c.h.b16 %v260
        %v588 = vunpack.c.l.b16 %v261
        %v589 = vunpack.c.h.b16 %v261
        %v590 = vunpack.c.l.b16 %v262
        %v591 = vunpack.c.h.b16 %v262
        %v592 = vunpack.c.l.b16 %v263
        %v593 = vunpack.c.h.b16 %v263
        %v594 = vunpack.c.l.b16 %v264
        %v595 = vunpack.c.h.b16 %v264
        %v596 = vunpack.c.l.b16 %v265
        %v597 = vunpack.c.h.b16 %v265
        %v598 = vunpack.c.l.b16 %v266
        %v599 = vunpack.c.h.b16 %v266
        %v600 = vunpack.c.l.b16 %v267
        %v601 = vunpack.c.h.b16 %v267
        %v602 = vunpack.c.l.b16 %v268
        %v603 = vunpack.c.h.b16 %v268
        %v604 = vunpack.c.l.b16 %v269
        %v605 = vunpack.c.h.b16 %v269
        %v606 = vunpack.c.l.b16 %v270
        %v607 = vunpack.c.h.b16 %v270
        %v608 = vunpack.c.l.b16 %v271
        %v609 = vunpack.c.h.b16 %v271
        %v610 = vunpack.c.l.b16 %v272
        %v611 = vunpack.c.h.b16 %v272
        %v612 = vunpack.c.l.b16 %v273
        %v613 = vunpack.c.h.b16 %v273
        %v614 = vunpack.c.l.b16 %v274
        %v615 = vunpack.c.h.b16 %v274
        %v616 = vunpack.c.l.b16 %v275
        %v617 = vunpack.c.h.b16 %v275
        %v618 = vunpack.c.l.b16 %v276
        %v619 = vunpack.c.h.b16 %v276
        %v620 = vunpack.c.l.b16 %v277
        %v621 = vunpack.c.h.b16 %v277
        %v622 = vunpack.c.l.b16 %v278
        %v623 = vunpack.c.h.b16 %v278
        %v624 = vunpack.c.l.b16 %v279
        %v625 = vunpack.c.h.b16 %v279
        %v626 = vunpack.c.l.b16 %v280
        %v627 = vunpack.c.h.b16 %v280
        %v628 = vunpack.c.l.b16 %v281
        %v629 = vunpack.c.h.b16 %v281
        %v630 = vunpack.c.l.b16 %v282
        %v631 = vunpack.c.h.b16 %v282
        %v632 = vunpack.c.l.b16 %v283
        %v633 = vunpack.c.h.b16 %v283
        %v634 = vunpack.c.l.b16 %v284
        %v635 = vunpack.c.h.b16 %v284
        %v636 = vunpack.c.l.b16 %v285
        %v637 = vunpack.c.h.b16 %v285
        %v638 = vunpack.c.l.b16 %v286
        %v639 = vunpack.c.h.b16 %v286
        %v640 = vunpack.c.l.b16 %v287
        %v641 = vunpack.c.h.b16 %v287
        %v642 = vunpack.c.l.b16 %v288
        %v643 = vunpack.c.h.b16 %v288
        %v644 = vunpack.c.l.b16 %v289
        %v645 = vunpack.c.h.b16 %v289
        %v646 = vunpack.c.l.b16 %v290
        %v647 = vunpack.c.h.b16 %v290
        %v648 = vunpack.c.l.b16 %v291
        %v649 = vunpack.c.h.b16 %v291
        %v650 = vunpack.c.l.b16 %v292
        %v651 = vunpack.c.h.b16 %v292
        %v652 = vunpack.c.l.b16 %v293
        %v653 = vunpack.c.h.b16 %v293
        %v654 = vunpack.c.l.b16 %v294
        %v655 = vunpack.c.h.b16 %v294
        %v656 = vunpack.c.l.b16 %v295
        %v657 = vunpack.c.h.b16 %v295
        %v658 = vunpack.c.l.b16 %v296
        %v659 = vunpack.c.h.b16 %v296
        %v660 = vunpack.c.l.b16 %v297
        %v661 = vunpack.c.h.b16 %v297
        %v662 = vunpack.c.l.b16 %v298
        %v663 = vunpack.c.h.b16 %v298
        %v664 = vunpack.c.l.b16 %v299
        %v665 = vunpack.c.h.b16 %v299
        %v666 = vunpack.c.l.b16 %v300
        %v667 = vunpack.c.h.b16 %v300
        %v668 = vunpack.c.l.b16 %v301
        %v669 = vunpack.c.h.b16 %v301
        %v670 = vunpack.c.l.b16 %v302
        %v671 = vunpack.c.h.b16 %v302
        %v672 = vunpack.c.l.b16 %v303
        %v673 = vunpack.c.h.b16 %v303
        %v674 = vunpack.c.l.b16 %v304
        %v675 = vunpack.c.h.b16 %v304
        %v676 = vunpack.c.l.b16 %v305
        %v677 = vunpack.c.h.b16 %v305
        %v678 = vunpack.c.l.b16 %v306
        %v679 = vunpack.c.h.b16 %v306
        %v680 = vunpack.c.l.b16 %v307
        %v681 = vunpack.c.h.b16 %v307
        %v682 = vunpack.c.l.b16 %v308
        %v683 = vunpack.c.h.b16 %v308
        %v684 = vunpack.c.l.b16 %v309
        %v685 = vunpack.c.h.b16 %v309
        %v686 = vunpack.c.l.b16 %v310
        %v687 = vunpack.c.h.b16 %v310
        %v688 = vunpack.c.l.b16 %v311
        %v689 = vunpack.c.h.b16 %v311
        %v690 = vunpack.c.l.b16 %v312
        %v691 = vunpack.c.h.b16 %v312
        %v692 = vunpack.c.l.b16 %v313
        %v693 = vunpack.c.h.b16 %v313
        %v694 = vunpack.c.l.b16 %v314
        %v695 = vunpack.c.h.b16 %v314
        %v696 = vunpack.c.l.b16 %v315
        %v697 = vunpack.c.h.b16 %v315
        %v698 = vunpack.c.l.b16 %v316
        %v699 = vunpack.c.h.b16 %v316
        %v700 = vunpack.c.l.b16 %v317
        %v701 = vunpack.c.h.b16 %v317
        %v702 = vunpack.c.l.b16 %v318
        %v703 = vunpack.c.h.b16 %v318
        %v704 = vunpack.c.l.b16 %v319
        %v705 = vunpack.c.h.b16 %v319
        %v706 = vunpack.c.l.b16 %v320
        %v707 = vunpack.c.h.b16 %v320
        %v708 = vunpack.c.l.b16 %v321
        %v709 = vunpack.c.h.b16 %v321
        %v710 = vunpack.c.l.b16 %v322
        %v711 = vunpack.c.h.b16 %v322
        %v712 = vunpack.c.l.b16 %v323
        %v713 = vunpack.c.h.b16 %v323
        %v714 = vunpack.c.l.b16 %v324
        %v715 = vunpack.c.h.b16 %v324
        %v716 = vunpack.c.l.b16 %v325
        %v717 = vunpack.c.h.b16 %v325
        %v718 = vunpack.c.l.b16 %v326
        %v719 = vunpack.c.h.b16 %v326
        %v720 = vunpack.c.l.b16 %v327
        %v721 = vunpack.c.h.b16 %v327
        %v722 = vunpack.c.l.b16 %v328
        %v723 = vunpack.c.h.b16 %v328
        %v724 = vunpack.c.l.b16 %v329
        %v725 = vunpack.c.h.b16 %v329
        %v726 = vunpack.c.l.b16 %v330
        %v727 = vunpack.c.h.b16 %v330
        %v728 = vunpack.c.l.b16 %v331
        %v729 = vunpack.c.h.b16 %v331
        %v730 = vunpack.c.l.b16 %v332
        %v731 = vunpack.c.h.b16 %v332
        %v732 = vunpack.c.l.b16 %v333
        %v733 = vunpack.c.h.b16 %v333
        %v734 = vunpack.c.l.b16 %v334
        %v735 = vunpack.c.h.b16 %v334
        %v736 = vunpack.c.l.b16 %v335
        %v737 = vunpack.c.h.b16 %v335
        %v738 = vunpack.c.l.b16 %v336
        %v739 = vunpack.c.h.b16 %v336
        %v740 = vunpack.c.l.b16 %v337
        %v741 = vunpack.c.h.b16 %v337
        %v742 = vunpack.c.l.b16 %v338
        %v743 = vunpack.c.h.b16 %v338
        %v744 = vunpack.c.l.b16 %v339
        %v745 = vunpack.c.h.b16 %v339
        %v746 = vunpack.c.l.b16 %v340
        %v747 = vunpack.c.h.b16 %v340
        %v748 = vunpack.c.l.b16 %v341
        %v749 = vunpack.c.h.b16 %v341
        %v750 = vunpack.c.l.b16 %v342
        %v751 = vunpack.c.h.b16 %v342
        %v752 = vunpack.c.l.b16 %v343
        %v753 = vunpack.c.h.b16 %v343
        %v754 = vunpack.c.l.b16 %v344
        %v755 = vunpack.c.h.b16 %v344
        %v756 = vunpack.c.l.b16 %v345
        %v757 = vunpack.c.h.b16 %v345
        %v758 = vunpack.c.l.b16 %v346
        %v759 = vunpack.c.h.b16 %v346
        %v760 = vunpack.c.l.b16 %v347
        %v761 = vunpack.c.h.b16 %v347
        %v762 = vunpack.c.l.b16 %v348
        %v763 = vunpack.c.h.b16 %v348
        %v764 = vunpack.c.l.b16 %v349
        %v765 = vunpack.c.h.b16 %v349
        %v766 = vunpack.c.l.b16 %v350
        %v767 = vunpack.c.h.b16 %v350
        %v768 = vunpack.c.l.b16 %v351
        %v769 = vunpack.c.h.b16 %v351
        %v770 = vunpack.c.l.b16 %v352
        %v771 = vunpack.c.h.b16 %v352
        %v772 = vunpack.c.l.b16 %v353
        %v773 = vunpack.c.h.b16 %v353
        %v774 = vunpack.c.l.b16 %v354
        %v775 = vunpack.c.h.b16 %v354
        %v776 = vunpack.c.l.b16 %v355
        %v777 = vunpack.c.h.b16 %v355
        %v778 = vunpack.c.l.b16 %v356
        %v779 = vunpack.c.h.b16 %v356
        %v780 = vunpack.c.l.b16 %v357
        %v781 = vunpack.c.h.b16 %v357
        %v782 = vunpack.c.l.b16 %v358
        %v783 = vunpack.c.h.b16 %v358
        %v784 = vunpack.c.l.b16 %v359
        %v785 = vunpack.c.h.b16 %v359
        %v786 = vunpack.c.l.b16 %v360
        %v787 = vunpack.c.h.b16 %v360
        %v788 = vunpack.c.l.b16 %v361
        %v789 = vunpack.c.h.b16 %v361
        %v790 = vunpack.c.l.b16 %v362
        %v791 = vunpack.c.h.b16 %v362
        %v792 = vunpack.c.l.b16 %v363
        %v793 = vunpack.c.h.b16 %v363
        %v794 = vunpack.c.l.b16 %v364
        %v795 = vunpack.c.h.b16 %v364
        %v796 = vunpack.c.l.b16 %v365
        %v797 = vunpack.c.h.b16 %v365
        %v798 = vunpack.c.l.b16 %v366
        %v799 = vunpack.c.h.b16 %v366
        %v800 = vunpack.c.l.b16 %v367
        %v801 = vunpack.c.h.b16 %v367
        %v802 = vunpack.c.l.b16 %v368
        %v803 = vunpack.c.h.b16 %v368
        %v804 = vunpack.c.l.b16 %v369
        %v805 = vunpack.c.h.b16 %v369
        %v806 = vunpack.c.l.b16 %v370
        %v807 = vunpack.c.h.b16 %v370
        %v808 = vunpack.c.l.b16 %v371
        %v809 = vunpack.c.h.b16 %v371
        %v810 = vunpack.c.l.b16 %v372
        %v811 = vunpack.c.h.b16 %v372
        %v812 = vunpack.c.l.b16 %v373
        %v813 = vunpack.c.h.b16 %v373
        %v814 = vunpack.c.l.b16 %v374
        %v815 = vunpack.c.h.b16 %v374
        %v816 = vunpack.c.l.b16 %v375
        %v817 = vunpack.c.h.b16 %v375
        %v818 = vunpack.c.l.b16 %v376
        %v819 = vunpack.c.h.b16 %v376
        %v820 = vunpack.c.l.b16 %v377
        %v821 = vunpack.c.h.b16 %v377
        %v822 = vunpack.c.l.b16 %v378
        %v823 = vunpack.c.h.b16 %v378
        %v824 = vunpack.c.l.b16 %v379
        %v825 = vunpack.c.h.b16 %v379
        %v826 = vunpack.c.l.b16 %v380
        %v827 = vunpack.c.h.b16 %v380
        %v828 = vunpack.c.l.b16 %v381
        %v829 = vunpack.c.h.b16 %v381
        %v830 = vpack.c.b16 %v578, %v574
        %v831 = vpack.c.b16 %v579, %v575
        %v832 = vpack.c.b16 %v580, %v576
        %v833 = vpack.c.b16 %v581, %v577
        %v834 = vpack.c.b16 %v586, %v582
        %v835 = vpack.c.b16 %v587, %v583
        %v836 = vpack.c.b16 %v588, %v584
        %v837 = vpack.c.b16 %v589, %v585
        %v838 = vpack.c.b16 %v594, %v590
        %v839 = vpack.c.b16 %v595, %v591
        %v840 = vpack.c.b16 %v596, %v592
        %v841 = vpack.c.b16 %v597, %v593
        %v842 = vpack.c.b16 %v602, %v598
        %v843 = vpack.c.b16 %v603, %v599
        %v844 = vpack.c.b16 %v604, %v600
        %v845 = vpack.c.b16 %v605, %v601
        %v846 = vpack.c.b16 %v610, %v606
        %v847 = vpack.c.b16 %v611, %v607
        %v848 = vpack.c.b16 %v612, %v608
        %v849 = vpack.c.b16 %v613, %v609
        %v850 = vpack.c.b16 %v618, %v614
        %v851 = vpack.c.b16 %v619, %v615
        %v852 = vpack.c.b16 %v620, %v616
        %v853 = vpack.c.b16 %v621, %v617
        %v854 = vpack.c.b16 %v626, %v622
        %v855 = vpack.c.b16 %v627, %v623
        %v856 = vpack.c.b16 %v628, %v624
        %v857 = vpack.c.b16 %v629, %v625
        %v858 = vpack.c.b16 %v634, %v630
        %v859 = vpack.c.b16 %v635, %v631
        %v860 = vpack.c.b16 %v636, %v632
        %v861 = vpack.c.b16 %v637, %v633
        %v862 = vpack.c.b16 %v642, %v638
        %v863 = vpack.c.b16 %v643, %v639
        %v864 = vpack.c.b16 %v644, %v640
        %v865 = vpack.c.b16 %v645, %v641
        %v866 = vpack.c.b16 %v650, %v646
        %v867 = vpack.c.b16 %v651, %v647
        %v868 = vpack.c.b16 %v652, %v648
        %v869 = vpack.c.b16 %v653, %v649
        %v870 = vpack.c.b16 %v658, %v654
        %v871 = vpack.c.b16 %v659, %v655
        %v872 = vpack.c.b16 %v660, %v656
        %v873 = vpack.c.b16 %v661, %v657
        %v874 = vpack.c.b16 %v666, %v662
        %v875 = vpack.c.b16 %v667, %v663
        %v876 = vpack.c.b16 %v668, %v664
        %v877 = vpack.c.b16 %v669, %v665
        %v878 = vpack.c.b16 %v674, %v670
        %v879 = vpack.c.b16 %v675, %v671
        %v880 = vpack.c.b16 %v676, %v672
        %v881 = vpack.c.b16 %v677, %v673
        %v882 = vpack.c.b16 %v682, %v678
        %v883 = vpack.c.b16 %v683, %v679
        %v884 = vpack.c.b16 %v684, %v680
        %v885 = vpack.c.b16 %v685, %v681
        %v886 = vpack.c.b16 %v690, %v686
        %v887 = vpack.c.b16 %v691, %v687
        %v888 = vpack.c.b16 %v692, %v688
        %v889 = vpack.c.b16 %v693, %v689
        %v890 = vpack.c.b16 %v698, %v694
        %v891 = vpack.c.b16 %v699, %v695
        %v892 = vpack.c.b16 %v700, %v696
        %v893 = vpack.c.b16 %v701, %v697
        %v894 = vpack.c.b16 %v706, %v702
        %v895 = vpack.c.b16 %v707, %v703
        %v896 = vpack.c.b16 %v708, %v704
        %v897 = vpack.c.b16 %v709, %v705
        %v898 = vpack.c.b16 %v714, %v710
        %v899 = vpack.c.b16 %v715, %v711
        %v900 = vpack.c.b16 %v716, %v712
        %v901 = vpack.c.b16 %v717, %v713
        %v902 = vpack.c.b16 %v722, %v718
        %v903 = vpack.c.b16 %v723, %v719
        %v904 = vpack.c.b16 %v724, %v720
        %v905 = vpack.c.b16 %v725, %v721
        %v906 = vpack.c.b16 %v730, %v726
        %v907 = vpack.c.b16 %v731, %v727
        %v908 = vpack.c.b16 %v732, %v728
        %v909 = vpack.c.b16 %v733, %v729
        %v910 = vpack.c.b16 %v738, %v734
        %v911 = vpack.c.b16 %v739, %v735
        %v912 = vpack.c.b16 %v740, %v736
        %v913 = vpack.c.b16 %v741, %v737
        %v914 = vpack.c.b16 %v746, %v742
        %v915 = vpack.c.b16 %v747, %v743
        %v916 = vpack.c.b16 %v748, %v744
        %v917 = vpack.c.b16 %v749, %v745
        %v918 = vpack.c.b16 %v754, %v750
        %v919 = vpack.c.b16 %v755, %v751
        %v920 = vpack.c.b16 %v756, %v752
        %v921 = vpack.c.b16 %v757, %v753
        %v922 = vpack.c.b16 %v762, %v758
        %v923 = vpack.c.b16 %v763, %v759
        %v924 = vpack.c.b16 %v764, %v760
        %v925 = vpack.c.b16 %v765, %v761
        %v926 = vpack.c.b16 %v770, %v766
        %v927 = vpack.c.b16 %v771, %v767
        %v928 = vpack.c.b16 %v772, %v768
        %v929 = vpack.c.b16 %v773, %v769
        %v930 = vpack.c.b16 %v778, %v774
        %v931 = vpack.c.b16 %v779, %v775
        %v932 = vpack.c.b16 %v780, %v776
        %v933 = vpack.c.b16 %v781, %v777
        %v934 = vpack.c.b16 %v786, %v782
        %v935 = vpack.c.b16 %v787, %v783
        %v936 = vpack.c.b16 %v788, %v784
        %v937 = vpack.c.b16 %v789, %v785
        %v938 = vpack.c.b16 %v794, %v790
        %v939 = vpack.c.b16 %v795, %v791
        %v940 = vpack.c.b16 %v796, %v792
        %v941 = vpack.c.b16 %v797, %v793
        %v942 = vpack.c.b16 %v802, %v798
        %v943 = vpack.c.b16 %v803, %v799
        %v944 = vpack.c.b16 %v804, %v800
        %v945 = vpack.c.b16 %v805, %v801
        %v946 = vpack.c.b16 %v810, %v806
        %v947 = vpack.c.b16 %v811, %v807
        %v948 = vpack.c.b16 %v812, %v808
        %v949 = vpack.c.b16 %v813, %v809
        %v950 = vpack.c.b16 %v818, %v814
        %v951 = vpack.c.b16 %v819, %v815
        %v952 = vpack.c.b16 %v820, %v816
        %v953 = vpack.c.b16 %v821, %v817
        %v954 = vpack.c.b16 %v826, %v822
        %v955 = vpack.c.b16 %v827, %v823
        %v956 = vpack.c.b16 %v828, %v824
        %v957 = vpack.c.b16 %v829, %v825
        %v1150 = vunpack.c.l.b16 %v382
        %v1151 = vunpack.c.l.b16 %v383
        %v1152 = vunpack.c.l.b16 %v384
        %v1153 = vunpack.c.l.b16 %v385
        %v1154 = vunpack.c.l.b16 %v386
        %v1155 = vunpack.c.l.b16 %v387
        %v1156 = vunpack.c.l.b16 %v388
        %v1157 = vunpack.c.l.b16 %v389
        %v1158 = vunpack.c.l.b16 %v390
        %v1159 = vunpack.c.l.b16 %v391
        %v1160 = vunpack.c.l.b16 %v392
        %v1161 = vunpack.c.l.b16 %v393
        %v1162 = vunpack.c.l.b16 %v394
        %v1163 = vunpack.c.l.b16 %v395
        %v1164 = vunpack.c.l.b16 %v396
        %v1165 = vunpack.c.l.b16 %v397
        %v1166 = vunpack.c.l.b16 %v398
        %v1167 = vunpack.c.l.b16 %v399
        %v1168 = vunpack.c.l.b16 %v400
        %v1169 = vunpack.c.l.b16 %v401
        %v1170 = vunpack.c.l.b16 %v402
        %v1171 = vunpack.c.l.b16 %v403
        %v1172 = vunpack.c.l.b16 %v404
        %v1173 = vunpack.c.l.b16 %v405
        %v1174 = vunpack.c.l.b16 %v406
        %v1175 = vunpack.c.l.b16 %v407
        %v1176 = vunpack.c.l.b16 %v408
        %v1177 = vunpack.c.l.b16 %v409
        %v1178 = vunpack.c.l.b16 %v410
        %v1179 = vunpack.c.l.b16 %v411
        %v1180 = vunpack.c.l.b16 %v412
        %v1181 = vunpack.c.l.b16 %v413
        %v1182 = vunpack.c.l.b16 %v414
        %v1183 = vunpack.c.l.b16 %v415
        %v1184 = vunpack.c.l.b16 %v416
        %v1185 = vunpack.c.l.b16 %v417
        %v1186 = vunpack.c.l.b16 %v418
        %v1187 = vunpack.c.l.b16 %v419
        %v1188 = vunpack.c.l.b16 %v420
        %v1189 = vunpack.c.l.b16 %v421
        %v1190 = vunpack.c.l.b16 %v422
        %v1191 = vunpack.c.l.b16 %v423
        %v1192 = vunpack.c.l.b16 %v424
        %v1193 = vunpack.c.l.b16 %v425
        %v1194 = vunpack.c.l.b16 %v426
        %v1195 = vunpack.c.l.b16 %v427
        %v1196 = vunpack.c.l.b16 %v428
        %v1197 = vunpack.c.l.b16 %v429
        %v1198 = vunpack.c.l.b16 %v430
        %v1199 = vunpack.c.l.b16 %v431
        %v1200 = vunpack.c.l.b16 %v432
        %v1201 = vunpack.c.l.b16 %v433
        %v1202 = vunpack.c.l.b16 %v434
        %v1203 = vunpack.c.l.b16 %v435
        %v1204 = vunpack.c.l.b16 %v436
        %v1205 = vunpack.c.l.b16 %v437
        %v1206 = vunpack.c.l.b16 %v438
        %v1207 = vunpack.c.l.b16 %v439
        %v1208 = vunpack.c.l.b16 %v440
        %v1209 = vunpack.c.l.b16 %v441
        %v1210 = vunpack.c.l.b16 %v442
        %v1211 = vunpack.c.l.b16 %v443
        %v1212 = vunpack.c.l.b16 %v444
        %v1213 = vunpack.c.l.b16 %v445
        %v1214 = vpack.c.b16 %v1151, %v1150
        %v1215 = vpack.c.b16 %v1153, %v1152
        %v1216 = vpack.c.b16 %v1155, %v1154
        %v1217 = vpack.c.b16 %v1157, %v1156
        %v1218 = vpack.c.b16 %v1159, %v1158
        %v1219 = vpack.c.b16 %v1161, %v1160
        %v1220 = vpack.c.b16 %v1163, %v1162
        %v1221 = vpack.c.b16 %v1165, %v1164
        %v1222 = vpack.c.b16 %v1167, %v1166
        %v1223 = vpack.c.b16 %v1169, %v1168
        %v1224 = vpack.c.b16 %v1171, %v1170
        %v1225 = vpack.c.b16 %v1173, %v1172
        %v1226 = vpack.c.b16 %v1175, %v1174
        %v1227 = vpack.c.b16 %v1177, %v1176
        %v1228 = vpack.c.b16 %v1179, %v1178
        %v1229 = vpack.c.b16 %v1181, %v1180
        %v1230 = vpack.c.b16 %v1183, %v1182
        %v1231 = vpack.c.b16 %v1185, %v1184
        %v1232 = vpack.c.b16 %v1187, %v1186
        %v1233 = vpack.c.b16 %v1189, %v1188
        %v1234 = vpack.c.b16 %v1191, %v1190
        %v1235 = vpack.c.b16 %v1193, %v1192
        %v1236 = vpack.c.b16 %v1195, %v1194
        %v1237 = vpack.c.b16 %v1197, %v1196
        %v1238 = vpack.c.b16 %v1199, %v1198
        %v1239 = vpack.c.b16 %v1201, %v1200
        %v1240 = vpack.c.b16 %v1203, %v1202
        %v1241 = vpack.c.b16 %v1205, %v1204
        %v1242 = vpack.c.b16 %v1207, %v1206
        %v1243 = vpack.c.b16 %v1209, %v1208
        %v1244 = vpack.c.b16 %v1211, %v1210
        %v1245 = vpack.c.b16 %v1213, %v1212
        %1278 = vmatpush.bf16.msra.mxu0 %v1221
        %1279 = vmatpush.bf16.msra.mxu0 %v1220
        %1280 = vmatpush.bf16.msra.mxu0 %v1219
        %1281 = vmatpush.bf16.msra.mxu0 %v1218
        %1282 = vmatpush.bf16.msra.mxu0 %v1217
        %1283 = vmatpush.bf16.msra.mxu0 %v1216
        %1284 = vmatpush.bf16.msra.mxu0 %v1215
        %1285 = vmatpush.bf16.msra.mxu0 %v1214
        %1286 = vmatmul.bf16.gmra.mxu0 %v830
        %v1287 = vpop.f32.mrf.mxu0
        %v1288 = vadd.f32 0.0, %v1287
        %v1289 = vpop.f32.mrf.mxu0
        %v1290 = vadd.f32 0.0, %v1289
        %1291 = vmatmul.bf16.gmra.mxu0 %v834
        %v1292 = vpop.f32.mrf.mxu0
        %v1293 = vadd.f32 0.0, %v1292
        %v1294 = vpop.f32.mrf.mxu0
        %v1295 = vadd.f32 0.0, %v1294
        %1296 = vmatmul.bf16.gmra.mxu0 %v838
        %v1297 = vpop.f32.mrf.mxu0
        %v1298 = vadd.f32 0.0, %v1297
        %v1299 = vpop.f32.mrf.mxu0
        %v1300 = vadd.f32 0.0, %v1299
        %1301 = vmatmul.bf16.gmra.mxu0 %v842
        %v1302 = vpop.f32.mrf.mxu0
        %v1303 = vadd.f32 0.0, %v1302
        %v1304 = vpop.f32.mrf.mxu0
        %v1305 = vadd.f32 0.0, %v1304
        %1306 = vmatmul.bf16.gmra.mxu0 %v846
        %v1307 = vpop.f32.mrf.mxu0
        %v1308 = vadd.f32 0.0, %v1307
        %v1309 = vpop.f32.mrf.mxu0
        %v1310 = vadd.f32 0.0, %v1309
        %1311 = vmatmul.bf16.gmra.mxu0 %v850
        %v1312 = vpop.f32.mrf.mxu0
        %v1313 = vadd.f32 0.0, %v1312
        %v1314 = vpop.f32.mrf.mxu0
        %v1315 = vadd.f32 0.0, %v1314
        %1316 = vmatmul.bf16.gmra.mxu0 %v854
        %v1317 = vpop.f32.mrf.mxu0
        %v1318 = vadd.f32 0.0, %v1317
        %v1319 = vpop.f32.mrf.mxu0
        %v1320 = vadd.f32 0.0, %v1319
        %1321 = vmatmul.bf16.gmra.mxu0 %v858
        %v1322 = vpop.f32.mrf.mxu0
        %v1323 = vadd.f32 0.0, %v1322
        %v1324 = vpop.f32.mrf.mxu0
        %v1325 = vadd.f32 0.0, %v1324
        %1326 = vmatmul.bf16.gmra.mxu0 %v862
        %v1327 = vpop.f32.mrf.mxu0
        %v1328 = vadd.f32 0.0, %v1327
        %v1329 = vpop.f32.mrf.mxu0
        %v1330 = vadd.f32 0.0, %v1329
        %1331 = vmatmul.bf16.gmra.mxu0 %v866
        %v1332 = vpop.f32.mrf.mxu0
        %v1333 = vadd.f32 0.0, %v1332
        %v1334 = vpop.f32.mrf.mxu0
        %v1335 = vadd.f32 0.0, %v1334
        %1336 = vmatmul.bf16.gmra.mxu0 %v870
        %v1337 = vpop.f32.mrf.mxu0
        %v1338 = vadd.f32 0.0, %v1337
        %v1339 = vpop.f32.mrf.mxu0
        %v1340 = vadd.f32 0.0, %v1339
        %1341 = vmatmul.bf16.gmra.mxu0 %v874
        %v1342 = vpop.f32.mrf.mxu0
        %v1343 = vadd.f32 0.0, %v1342
        %v1344 = vpop.f32.mrf.mxu0
        %v1345 = vadd.f32 0.0, %v1344
        %1346 = vmatmul.bf16.gmra.mxu0 %v878
        %v1347 = vpop.f32.mrf.mxu0
        %v1348 = vadd.f32 0.0, %v1347
        %v1349 = vpop.f32.mrf.mxu0
        %v1350 = vadd.f32 0.0, %v1349
        %1351 = vmatmul.bf16.gmra.mxu0 %v882
        %v1352 = vpop.f32.mrf.mxu0
        %v1353 = vadd.f32 0.0, %v1352
        %v1354 = vpop.f32.mrf.mxu0
        %v1355 = vadd.f32 0.0, %v1354
        %1356 = vmatmul.bf16.gmra.mxu0 %v886
        %v1357 = vpop.f32.mrf.mxu0
        %v1358 = vadd.f32 0.0, %v1357
        %v1359 = vpop.f32.mrf.mxu0
        %v1360 = vadd.f32 0.0, %v1359
        %1361 = vmatmul.bf16.gmra.mxu0 %v890
        %v1362 = vpop.f32.mrf.mxu0
        %v1363 = vadd.f32 0.0, %v1362
        %v1364 = vpop.f32.mrf.mxu0
        %v1365 = vadd.f32 0.0, %v1364
        %1366 = vmatmul.bf16.gmra.mxu0 %v894
        %v1367 = vpop.f32.mrf.mxu0
        %v1368 = vadd.f32 0.0, %v1367
        %v1369 = vpop.f32.mrf.mxu0
        %v1370 = vadd.f32 0.0, %v1369
        %1371 = vmatmul.bf16.gmra.mxu0 %v898
        %v1372 = vpop.f32.mrf.mxu0
        %v1373 = vadd.f32 0.0, %v1372
        %v1374 = vpop.f32.mrf.mxu0
        %v1375 = vadd.f32 0.0, %v1374
        %1376 = vmatmul.bf16.gmra.mxu0 %v902
        %v1377 = vpop.f32.mrf.mxu0
        %v1378 = vadd.f32 0.0, %v1377
        %v1379 = vpop.f32.mrf.mxu0
        %v1380 = vadd.f32 0.0, %v1379
        %1381 = vmatmul.bf16.gmra.mxu0 %v906
        %v1382 = vpop.f32.mrf.mxu0
        %v1383 = vadd.f32 0.0, %v1382
        %v1384 = vpop.f32.mrf.mxu0
        %v1385 = vadd.f32 0.0, %v1384
        %1386 = vmatmul.bf16.gmra.mxu0 %v910
        %v1387 = vpop.f32.mrf.mxu0
        %v1388 = vadd.f32 0.0, %v1387
        %v1389 = vpop.f32.mrf.mxu0
        %v1390 = vadd.f32 0.0, %v1389
        %1391 = vmatmul.bf16.gmra.mxu0 %v914
        %v1392 = vpop.f32.mrf.mxu0
        %v1393 = vadd.f32 0.0, %v1392
        %v1394 = vpop.f32.mrf.mxu0
        %v1395 = vadd.f32 0.0, %v1394
        %1396 = vmatmul.bf16.gmra.mxu0 %v918
        %v1397 = vpop.f32.mrf.mxu0
        %v1398 = vadd.f32 0.0, %v1397
        %v1399 = vpop.f32.mrf.mxu0
        %v1400 = vadd.f32 0.0, %v1399
        %1401 = vmatmul.bf16.gmra.mxu0 %v922
        %v1402 = vpop.f32.mrf.mxu0
        %v1403 = vadd.f32 0.0, %v1402
        %v1404 = vpop.f32.mrf.mxu0
        %v1405 = vadd.f32 0.0, %v1404
        %1406 = vmatmul.bf16.gmra.mxu0 %v926
        %v1407 = vpop.f32.mrf.mxu0
        %v1408 = vadd.f32 0.0, %v1407
        %v1409 = vpop.f32.mrf.mxu0
        %v1410 = vadd.f32 0.0, %v1409
        %1411 = vmatmul.bf16.gmra.mxu0 %v930
        %v1412 = vpop.f32.mrf.mxu0
        %v1413 = vadd.f32 0.0, %v1412
        %v1414 = vpop.f32.mrf.mxu0
        %v1415 = vadd.f32 0.0, %v1414
        %1416 = vmatmul.bf16.gmra.mxu0 %v934
        %v1417 = vpop.f32.mrf.mxu0
        %v1418 = vadd.f32 0.0, %v1417
        %v1419 = vpop.f32.mrf.mxu0
        %v1420 = vadd.f32 0.0, %v1419
        %1421 = vmatmul.bf16.gmra.mxu0 %v938
        %v1422 = vpop.f32.mrf.mxu0
        %v1423 = vadd.f32 0.0, %v1422
        %v1424 = vpop.f32.mrf.mxu0
        %v1425 = vadd.f32 0.0, %v1424
        %1426 = vmatmul.bf16.gmra.mxu0 %v942
        %v1427 = vpop.f32.mrf.mxu0
        %v1428 = vadd.f32 0.0, %v1427
        %v1429 = vpop.f32.mrf.mxu0
        %v1430 = vadd.f32 0.0, %v1429
        %1431 = vmatmul.bf16.gmra.mxu0 %v946
        %v1432 = vpop.f32.mrf.mxu0
        %v1433 = vadd.f32 0.0, %v1432
        %v1434 = vpop.f32.mrf.mxu0
        %v1435 = vadd.f32 0.0, %v1434
        %1436 = vmatmul.bf16.gmra.mxu0 %v950
        %v1437 = vpop.f32.mrf.mxu0
        %v1438 = vadd.f32 0.0, %v1437
        %v1439 = vpop.f32.mrf.mxu0
        %v1440 = vadd.f32 0.0, %v1439
        %1441 = vmatmul.bf16.gmra.mxu0 %v954
        %v1442 = vpop.f32.mrf.mxu0
        %v1443 = vadd.f32 0.0, %v1442
        %v1444 = vpop.f32.mrf.mxu0
        %v1445 = vadd.f32 0.0, %v1444
        %1446 = vdwg.mxu0
        %1447 = vmatpush.bf16.msra.mxu0 %v1229
        %1448 = vmatpush.bf16.msra.mxu0 %v1228
        %1449 = vmatpush.bf16.msra.mxu0 %v1227
        %1450 = vmatpush.bf16.msra.mxu0 %v1226
        %1451 = vmatpush.bf16.msra.mxu0 %v1225
        %1452 = vmatpush.bf16.msra.mxu0 %v1224
        %1453 = vmatpush.bf16.msra.mxu0 %v1223
        %1454 = vmatpush.bf16.msra.mxu0 %v1222
        %1455 = vmatmul.bf16.gmra.mxu0 %v831
        %v1456 = vpop.f32.mrf.mxu0
        %v1457 = vadd.f32 %v1288, %v1456
        %v1458 = vpop.f32.mrf.mxu0
        %v1459 = vadd.f32 %v1290, %v1458
        %1460 = vmatmul.bf16.gmra.mxu0 %v835
        %v1461 = vpop.f32.mrf.mxu0
        %v1462 = vadd.f32 %v1293, %v1461
        %v1463 = vpop.f32.mrf.mxu0
        %v1464 = vadd.f32 %v1295, %v1463
        %1465 = vmatmul.bf16.gmra.mxu0 %v839
        %v1466 = vpop.f32.mrf.mxu0
        %v1467 = vadd.f32 %v1298, %v1466
        %v1468 = vpop.f32.mrf.mxu0
        %v1469 = vadd.f32 %v1300, %v1468
        %1470 = vmatmul.bf16.gmra.mxu0 %v843
        %v1471 = vpop.f32.mrf.mxu0
        %v1472 = vadd.f32 %v1303, %v1471
        %v1473 = vpop.f32.mrf.mxu0
        %v1474 = vadd.f32 %v1305, %v1473
        %1475 = vmatmul.bf16.gmra.mxu0 %v847
        %v1476 = vpop.f32.mrf.mxu0
        %v1477 = vadd.f32 %v1308, %v1476
        %v1478 = vpop.f32.mrf.mxu0
        %v1479 = vadd.f32 %v1310, %v1478
        %1480 = vmatmul.bf16.gmra.mxu0 %v851
        %v1481 = vpop.f32.mrf.mxu0
        %v1482 = vadd.f32 %v1313, %v1481
        %v1483 = vpop.f32.mrf.mxu0
        %v1484 = vadd.f32 %v1315, %v1483
        %1485 = vmatmul.bf16.gmra.mxu0 %v855
        %v1486 = vpop.f32.mrf.mxu0
        %v1487 = vadd.f32 %v1318, %v1486
        %v1488 = vpop.f32.mrf.mxu0
        %v1489 = vadd.f32 %v1320, %v1488
        %1490 = vmatmul.bf16.gmra.mxu0 %v859
        %v1491 = vpop.f32.mrf.mxu0
        %v1492 = vadd.f32 %v1323, %v1491
        %v1493 = vpop.f32.mrf.mxu0
        %v1494 = vadd.f32 %v1325, %v1493
        %1495 = vmatmul.bf16.gmra.mxu0 %v863
        %v1496 = vpop.f32.mrf.mxu0
        %v1497 = vadd.f32 %v1328, %v1496
        %v1498 = vpop.f32.mrf.mxu0
        %v1499 = vadd.f32 %v1330, %v1498
        %1500 = vmatmul.bf16.gmra.mxu0 %v867
        %v1501 = vpop.f32.mrf.mxu0
        %v1502 = vadd.f32 %v1333, %v1501
        %v1503 = vpop.f32.mrf.mxu0
        %v1504 = vadd.f32 %v1335, %v1503
        %1505 = vmatmul.bf16.gmra.mxu0 %v871
        %v1506 = vpop.f32.mrf.mxu0
        %v1507 = vadd.f32 %v1338, %v1506
        %v1508 = vpop.f32.mrf.mxu0
        %v1509 = vadd.f32 %v1340, %v1508
        %1510 = vmatmul.bf16.gmra.mxu0 %v875
        %v1511 = vpop.f32.mrf.mxu0
        %v1512 = vadd.f32 %v1343, %v1511
        %v1513 = vpop.f32.mrf.mxu0
        %v1514 = vadd.f32 %v1345, %v1513
        %1515 = vmatmul.bf16.gmra.mxu0 %v879
        %v1516 = vpop.f32.mrf.mxu0
        %v1517 = vadd.f32 %v1348, %v1516
        %v1518 = vpop.f32.mrf.mxu0
        %v1519 = vadd.f32 %v1350, %v1518
        %1520 = vmatmul.bf16.gmra.mxu0 %v883
        %v1521 = vpop.f32.mrf.mxu0
        %v1522 = vadd.f32 %v1353, %v1521
        %v1523 = vpop.f32.mrf.mxu0
        %v1524 = vadd.f32 %v1355, %v1523
        %1525 = vmatmul.bf16.gmra.mxu0 %v887
        %v1526 = vpop.f32.mrf.mxu0
        %v1527 = vadd.f32 %v1358, %v1526
        %v1528 = vpop.f32.mrf.mxu0
        %v1529 = vadd.f32 %v1360, %v1528
        %1530 = vmatmul.bf16.gmra.mxu0 %v891
        %v1531 = vpop.f32.mrf.mxu0
        %v1532 = vadd.f32 %v1363, %v1531
        %v1533 = vpop.f32.mrf.mxu0
        %v1534 = vadd.f32 %v1365, %v1533
        %1535 = vmatmul.bf16.gmra.mxu0 %v895
        %v1536 = vpop.f32.mrf.mxu0
        %v1537 = vadd.f32 %v1368, %v1536
        %v1538 = vpop.f32.mrf.mxu0
        %v1539 = vadd.f32 %v1370, %v1538
        %1540 = vmatmul.bf16.gmra.mxu0 %v899
        %v1541 = vpop.f32.mrf.mxu0
        %v1542 = vadd.f32 %v1373, %v1541
        %v1543 = vpop.f32.mrf.mxu0
        %v1544 = vadd.f32 %v1375, %v1543
        %1545 = vmatmul.bf16.gmra.mxu0 %v903
        %v1546 = vpop.f32.mrf.mxu0
        %v1547 = vadd.f32 %v1378, %v1546
        %v1548 = vpop.f32.mrf.mxu0
        %v1549 = vadd.f32 %v1380, %v1548
        %1550 = vmatmul.bf16.gmra.mxu0 %v907
        %v1551 = vpop.f32.mrf.mxu0
        %v1552 = vadd.f32 %v1383, %v1551
        %v1553 = vpop.f32.mrf.mxu0
        %v1554 = vadd.f32 %v1385, %v1553
        %1555 = vmatmul.bf16.gmra.mxu0 %v911
        %v1556 = vpop.f32.mrf.mxu0
        %v1557 = vadd.f32 %v1388, %v1556
        %v1558 = vpop.f32.mrf.mxu0
        %v1559 = vadd.f32 %v1390, %v1558
        %1560 = vmatmul.bf16.gmra.mxu0 %v915
        %v1561 = vpop.f32.mrf.mxu0
        %v1562 = vadd.f32 %v1393, %v1561
        %v1563 = vpop.f32.mrf.mxu0
        %v1564 = vadd.f32 %v1395, %v1563
        %1565 = vmatmul.bf16.gmra.mxu0 %v919
        %v1566 = vpop.f32.mrf.mxu0
        %v1567 = vadd.f32 %v1398, %v1566
        %v1568 = vpop.f32.mrf.mxu0
        %v1569 = vadd.f32 %v1400, %v1568
        %1570 = vmatmul.bf16.gmra.mxu0 %v923
        %v1571 = vpop.f32.mrf.mxu0
        %v1572 = vadd.f32 %v1403, %v1571
        %v1573 = vpop.f32.mrf.mxu0
        %v1574 = vadd.f32 %v1405, %v1573
        %1575 = vmatmul.bf16.gmra.mxu0 %v927
        %v1576 = vpop.f32.mrf.mxu0
        %v1577 = vadd.f32 %v1408, %v1576
        %v1578 = vpop.f32.mrf.mxu0
        %v1579 = vadd.f32 %v1410, %v1578
        %1580 = vmatmul.bf16.gmra.mxu0 %v931
        %v1581 = vpop.f32.mrf.mxu0
        %v1582 = vadd.f32 %v1413, %v1581
        %v1583 = vpop.f32.mrf.mxu0
        %v1584 = vadd.f32 %v1415, %v1583
        %1585 = vmatmul.bf16.gmra.mxu0 %v935
        %v1586 = vpop.f32.mrf.mxu0
        %v1587 = vadd.f32 %v1418, %v1586
        %v1588 = vpop.f32.mrf.mxu0
        %v1589 = vadd.f32 %v1420, %v1588
        %1590 = vmatmul.bf16.gmra.mxu0 %v939
        %v1591 = vpop.f32.mrf.mxu0
        %v1592 = vadd.f32 %v1423, %v1591
        %v1593 = vpop.f32.mrf.mxu0
        %v1594 = vadd.f32 %v1425, %v1593
        %1595 = vmatmul.bf16.gmra.mxu0 %v943
        %v1596 = vpop.f32.mrf.mxu0
        %v1597 = vadd.f32 %v1428, %v1596
        %v1598 = vpop.f32.mrf.mxu0
        %v1599 = vadd.f32 %v1430, %v1598
        %1600 = vmatmul.bf16.gmra.mxu0 %v947
        %v1601 = vpop.f32.mrf.mxu0
        %v1602 = vadd.f32 %v1433, %v1601
        %v1603 = vpop.f32.mrf.mxu0
        %v1604 = vadd.f32 %v1435, %v1603
        %1605 = vmatmul.bf16.gmra.mxu0 %v951
        %v1606 = vpop.f32.mrf.mxu0
        %v1607 = vadd.f32 %v1438, %v1606
        %v1608 = vpop.f32.mrf.mxu0
        %v1609 = vadd.f32 %v1440, %v1608
        %1610 = vmatmul.bf16.gmra.mxu0 %v955
        %v1611 = vpop.f32.mrf.mxu0
        %v1612 = vadd.f32 %v1443, %v1611
        %v1613 = vpop.f32.mrf.mxu0
        %v1614 = vadd.f32 %v1445, %v1613
        %1615 = vdwg.mxu0
        %1616 = vmatpush.bf16.msra.mxu0 %v1237
        %1617 = vmatpush.bf16.msra.mxu0 %v1236
        %1618 = vmatpush.bf16.msra.mxu0 %v1235
        %1619 = vmatpush.bf16.msra.mxu0 %v1234
        %1620 = vmatpush.bf16.msra.mxu0 %v1233
        %1621 = vmatpush.bf16.msra.mxu0 %v1232
        %1622 = vmatpush.bf16.msra.mxu0 %v1231
        %1623 = vmatpush.bf16.msra.mxu0 %v1230
        %1624 = vmatmul.bf16.gmra.mxu0 %v832
        %v1625 = vpop.f32.mrf.mxu0
        %v1626 = vadd.f32 %v1457, %v1625
        %v1627 = vpop.f32.mrf.mxu0
        %v1628 = vadd.f32 %v1459, %v1627
        %1629 = vmatmul.bf16.gmra.mxu0 %v836
        %v1630 = vpop.f32.mrf.mxu0
        %v1631 = vadd.f32 %v1462, %v1630
        %v1632 = vpop.f32.mrf.mxu0
        %v1633 = vadd.f32 %v1464, %v1632
        %1634 = vmatmul.bf16.gmra.mxu0 %v840
        %v1635 = vpop.f32.mrf.mxu0
        %v1636 = vadd.f32 %v1467, %v1635
        %v1637 = vpop.f32.mrf.mxu0
        %v1638 = vadd.f32 %v1469, %v1637
        %1639 = vmatmul.bf16.gmra.mxu0 %v844
        %v1640 = vpop.f32.mrf.mxu0
        %v1641 = vadd.f32 %v1472, %v1640
        %v1642 = vpop.f32.mrf.mxu0
        %v1643 = vadd.f32 %v1474, %v1642
        %1644 = vmatmul.bf16.gmra.mxu0 %v848
        %v1645 = vpop.f32.mrf.mxu0
        %v1646 = vadd.f32 %v1477, %v1645
        %v1647 = vpop.f32.mrf.mxu0
        %v1648 = vadd.f32 %v1479, %v1647
        %1649 = vmatmul.bf16.gmra.mxu0 %v852
        %v1650 = vpop.f32.mrf.mxu0
        %v1651 = vadd.f32 %v1482, %v1650
        %v1652 = vpop.f32.mrf.mxu0
        %v1653 = vadd.f32 %v1484, %v1652
        %1654 = vmatmul.bf16.gmra.mxu0 %v856
        %v1655 = vpop.f32.mrf.mxu0
        %v1656 = vadd.f32 %v1487, %v1655
        %v1657 = vpop.f32.mrf.mxu0
        %v1658 = vadd.f32 %v1489, %v1657
        %1659 = vmatmul.bf16.gmra.mxu0 %v860
        %v1660 = vpop.f32.mrf.mxu0
        %v1661 = vadd.f32 %v1492, %v1660
        %v1662 = vpop.f32.mrf.mxu0
        %v1663 = vadd.f32 %v1494, %v1662
        %1664 = vmatmul.bf16.gmra.mxu0 %v864
        %v1665 = vpop.f32.mrf.mxu0
        %v1666 = vadd.f32 %v1497, %v1665
        %v1667 = vpop.f32.mrf.mxu0
        %v1668 = vadd.f32 %v1499, %v1667
        %1669 = vmatmul.bf16.gmra.mxu0 %v868
        %v1670 = vpop.f32.mrf.mxu0
        %v1671 = vadd.f32 %v1502, %v1670
        %v1672 = vpop.f32.mrf.mxu0
        %v1673 = vadd.f32 %v1504, %v1672
        %1674 = vmatmul.bf16.gmra.mxu0 %v872
        %v1675 = vpop.f32.mrf.mxu0
        %v1676 = vadd.f32 %v1507, %v1675
        %v1677 = vpop.f32.mrf.mxu0
        %v1678 = vadd.f32 %v1509, %v1677
        %1679 = vmatmul.bf16.gmra.mxu0 %v876
        %v1680 = vpop.f32.mrf.mxu0
        %v1681 = vadd.f32 %v1512, %v1680
        %v1682 = vpop.f32.mrf.mxu0
        %v1683 = vadd.f32 %v1514, %v1682
        %1684 = vmatmul.bf16.gmra.mxu0 %v880
        %v1685 = vpop.f32.mrf.mxu0
        %v1686 = vadd.f32 %v1517, %v1685
        %v1687 = vpop.f32.mrf.mxu0
        %v1688 = vadd.f32 %v1519, %v1687
        %1689 = vmatmul.bf16.gmra.mxu0 %v884
        %v1690 = vpop.f32.mrf.mxu0
        %v1691 = vadd.f32 %v1522, %v1690
        %v1692 = vpop.f32.mrf.mxu0
        %v1693 = vadd.f32 %v1524, %v1692
        %1694 = vmatmul.bf16.gmra.mxu0 %v888
        %v1695 = vpop.f32.mrf.mxu0
        %v1696 = vadd.f32 %v1527, %v1695
        %v1697 = vpop.f32.mrf.mxu0
        %v1698 = vadd.f32 %v1529, %v1697
        %1699 = vmatmul.bf16.gmra.mxu0 %v892
        %v1700 = vpop.f32.mrf.mxu0
        %v1701 = vadd.f32 %v1532, %v1700
        %v1702 = vpop.f32.mrf.mxu0
        %v1703 = vadd.f32 %v1534, %v1702
        %1704 = vmatmul.bf16.gmra.mxu0 %v896
        %v1705 = vpop.f32.mrf.mxu0
        %v1706 = vadd.f32 %v1537, %v1705
        %v1707 = vpop.f32.mrf.mxu0
        %v1708 = vadd.f32 %v1539, %v1707
        %1709 = vmatmul.bf16.gmra.mxu0 %v900
        %v1710 = vpop.f32.mrf.mxu0
        %v1711 = vadd.f32 %v1542, %v1710
        %v1712 = vpop.f32.mrf.mxu0
        %v1713 = vadd.f32 %v1544, %v1712
        %1714 = vmatmul.bf16.gmra.mxu0 %v904
        %v1715 = vpop.f32.mrf.mxu0
        %v1716 = vadd.f32 %v1547, %v1715
        %v1717 = vpop.f32.mrf.mxu0
        %v1718 = vadd.f32 %v1549, %v1717
        %1719 = vmatmul.bf16.gmra.mxu0 %v908
        %v1720 = vpop.f32.mrf.mxu0
        %v1721 = vadd.f32 %v1552, %v1720
        %v1722 = vpop.f32.mrf.mxu0
        %v1723 = vadd.f32 %v1554, %v1722
        %1724 = vmatmul.bf16.gmra.mxu0 %v912
        %v1725 = vpop.f32.mrf.mxu0
        %v1726 = vadd.f32 %v1557, %v1725
        %v1727 = vpop.f32.mrf.mxu0
        %v1728 = vadd.f32 %v1559, %v1727
        %1729 = vmatmul.bf16.gmra.mxu0 %v916
        %v1730 = vpop.f32.mrf.mxu0
        %v1731 = vadd.f32 %v1562, %v1730
        %v1732 = vpop.f32.mrf.mxu0
        %v1733 = vadd.f32 %v1564, %v1732
        %1734 = vmatmul.bf16.gmra.mxu0 %v920
        %v1735 = vpop.f32.mrf.mxu0
        %v1736 = vadd.f32 %v1567, %v1735
        %v1737 = vpop.f32.mrf.mxu0
        %v1738 = vadd.f32 %v1569, %v1737
        %1739 = vmatmul.bf16.gmra.mxu0 %v924
        %v1740 = vpop.f32.mrf.mxu0
        %v1741 = vadd.f32 %v1572, %v1740
        %v1742 = vpop.f32.mrf.mxu0
        %v1743 = vadd.f32 %v1574, %v1742
        %1744 = vmatmul.bf16.gmra.mxu0 %v928
        %v1745 = vpop.f32.mrf.mxu0
        %v1746 = vadd.f32 %v1577, %v1745
        %v1747 = vpop.f32.mrf.mxu0
        %v1748 = vadd.f32 %v1579, %v1747
        %1749 = vmatmul.bf16.gmra.mxu0 %v932
        %v1750 = vpop.f32.mrf.mxu0
        %v1751 = vadd.f32 %v1582, %v1750
        %v1752 = vpop.f32.mrf.mxu0
        %v1753 = vadd.f32 %v1584, %v1752
        %1754 = vmatmul.bf16.gmra.mxu0 %v936
        %v1755 = vpop.f32.mrf.mxu0
        %v1756 = vadd.f32 %v1587, %v1755
        %v1757 = vpop.f32.mrf.mxu0
        %v1758 = vadd.f32 %v1589, %v1757
        %1759 = vmatmul.bf16.gmra.mxu0 %v940
        %v1760 = vpop.f32.mrf.mxu0
        %v1761 = vadd.f32 %v1592, %v1760
        %v1762 = vpop.f32.mrf.mxu0
        %v1763 = vadd.f32 %v1594, %v1762
        %1764 = vmatmul.bf16.gmra.mxu0 %v944
        %v1765 = vpop.f32.mrf.mxu0
        %v1766 = vadd.f32 %v1597, %v1765
        %v1767 = vpop.f32.mrf.mxu0
        %v1768 = vadd.f32 %v1599, %v1767
        %1769 = vmatmul.bf16.gmra.mxu0 %v948
        %v1770 = vpop.f32.mrf.mxu0
        %v1771 = vadd.f32 %v1602, %v1770
        %v1772 = vpop.f32.mrf.mxu0
        %v1773 = vadd.f32 %v1604, %v1772
        %1774 = vmatmul.bf16.gmra.mxu0 %v952
        %v1775 = vpop.f32.mrf.mxu0
        %v1776 = vadd.f32 %v1607, %v1775
        %v1777 = vpop.f32.mrf.mxu0
        %v1778 = vadd.f32 %v1609, %v1777
        %1779 = vmatmul.bf16.gmra.mxu0 %v956
        %v1780 = vpop.f32.mrf.mxu0
        %v1781 = vadd.f32 %v1612, %v1780
        %v1782 = vpop.f32.mrf.mxu0
        %v1783 = vadd.f32 %v1614, %v1782
        %1784 = vdwg.mxu0
        %1785 = vmatpush.bf16.msra.mxu0 %v1245
        %1786 = vmatpush.bf16.msra.mxu0 %v1244
        %1787 = vmatpush.bf16.msra.mxu0 %v1243
        %1788 = vmatpush.bf16.msra.mxu0 %v1242
        %1789 = vmatpush.bf16.msra.mxu0 %v1241
        %1790 = vmatpush.bf16.msra.mxu0 %v1240
        %1791 = vmatpush.bf16.msra.mxu0 %v1239
        %1792 = vmatpush.bf16.msra.mxu0 %v1238
        %1793 = vmatmul.bf16.gmra.mxu0 %v833
        %v1794 = vpop.f32.mrf.mxu0
        %v1795 = vadd.f32 %v1626, %v1794
        %v1796 = vpop.f32.mrf.mxu0
        %v1797 = vadd.f32 %v1628, %v1796
        %1798 = vmatmul.bf16.gmra.mxu0 %v837
        %v1799 = vpop.f32.mrf.mxu0
        %v1800 = vadd.f32 %v1631, %v1799
        %v1801 = vpop.f32.mrf.mxu0
        %v1802 = vadd.f32 %v1633, %v1801
        %1803 = vmatmul.bf16.gmra.mxu0 %v841
        %v1804 = vpop.f32.mrf.mxu0
        %v1805 = vadd.f32 %v1636, %v1804
        %v1806 = vpop.f32.mrf.mxu0
        %v1807 = vadd.f32 %v1638, %v1806
        %1808 = vmatmul.bf16.gmra.mxu0 %v845
        %v1809 = vpop.f32.mrf.mxu0
        %v1810 = vadd.f32 %v1641, %v1809
        %v1811 = vpop.f32.mrf.mxu0
        %v1812 = vadd.f32 %v1643, %v1811
        %1813 = vmatmul.bf16.gmra.mxu0 %v849
        %v1814 = vpop.f32.mrf.mxu0
        %v1815 = vadd.f32 %v1646, %v1814
        %v1816 = vpop.f32.mrf.mxu0
        %v1817 = vadd.f32 %v1648, %v1816
        %1818 = vmatmul.bf16.gmra.mxu0 %v853
        %v1819 = vpop.f32.mrf.mxu0
        %v1820 = vadd.f32 %v1651, %v1819
        %v1821 = vpop.f32.mrf.mxu0
        %v1822 = vadd.f32 %v1653, %v1821
        %1823 = vmatmul.bf16.gmra.mxu0 %v857
        %v1824 = vpop.f32.mrf.mxu0
        %v1825 = vadd.f32 %v1656, %v1824
        %v1826 = vpop.f32.mrf.mxu0
        %v1827 = vadd.f32 %v1658, %v1826
        %1828 = vmatmul.bf16.gmra.mxu0 %v861
        %v1829 = vpop.f32.mrf.mxu0
        %v1830 = vadd.f32 %v1661, %v1829
        %v1831 = vpop.f32.mrf.mxu0
        %v1832 = vadd.f32 %v1663, %v1831
        %1833 = vmatmul.bf16.gmra.mxu0 %v865
        %v1834 = vpop.f32.mrf.mxu0
        %v1835 = vadd.f32 %v1666, %v1834
        %v1836 = vpop.f32.mrf.mxu0
        %v1837 = vadd.f32 %v1668, %v1836
        %1838 = vmatmul.bf16.gmra.mxu0 %v869
        %v1839 = vpop.f32.mrf.mxu0
        %v1840 = vadd.f32 %v1671, %v1839
        %v1841 = vpop.f32.mrf.mxu0
        %v1842 = vadd.f32 %v1673, %v1841
        %1843 = vmatmul.bf16.gmra.mxu0 %v873
        %v1844 = vpop.f32.mrf.mxu0
        %v1845 = vadd.f32 %v1676, %v1844
        %v1846 = vpop.f32.mrf.mxu0
        %v1847 = vadd.f32 %v1678, %v1846
        %1848 = vmatmul.bf16.gmra.mxu0 %v877
        %v1849 = vpop.f32.mrf.mxu0
        %v1850 = vadd.f32 %v1681, %v1849
        %v1851 = vpop.f32.mrf.mxu0
        %v1852 = vadd.f32 %v1683, %v1851
        %1853 = vmatmul.bf16.gmra.mxu0 %v881
        %v1854 = vpop.f32.mrf.mxu0
        %v1855 = vadd.f32 %v1686, %v1854
        %v1856 = vpop.f32.mrf.mxu0
        %v1857 = vadd.f32 %v1688, %v1856
        %1858 = vmatmul.bf16.gmra.mxu0 %v885
        %v1859 = vpop.f32.mrf.mxu0
        %v1860 = vadd.f32 %v1691, %v1859
        %v1861 = vpop.f32.mrf.mxu0
        %v1862 = vadd.f32 %v1693, %v1861
        %1863 = vmatmul.bf16.gmra.mxu0 %v889
        %v1864 = vpop.f32.mrf.mxu0
        %v1865 = vadd.f32 %v1696, %v1864
        %v1866 = vpop.f32.mrf.mxu0
        %v1867 = vadd.f32 %v1698, %v1866
        %1868 = vmatmul.bf16.gmra.mxu0 %v893
        %v1869 = vpop.f32.mrf.mxu0
        %v1870 = vadd.f32 %v1701, %v1869
        %v1871 = vpop.f32.mrf.mxu0
        %v1872 = vadd.f32 %v1703, %v1871
        %1873 = vmatmul.bf16.gmra.mxu0 %v897
        %v1874 = vpop.f32.mrf.mxu0
        %v1875 = vadd.f32 %v1706, %v1874
        %v1876 = vpop.f32.mrf.mxu0
        %v1877 = vadd.f32 %v1708, %v1876
        %1878 = vmatmul.bf16.gmra.mxu0 %v901
        %v1879 = vpop.f32.mrf.mxu0
        %v1880 = vadd.f32 %v1711, %v1879
        %v1881 = vpop.f32.mrf.mxu0
        %v1882 = vadd.f32 %v1713, %v1881
        %1883 = vmatmul.bf16.gmra.mxu0 %v905
        %v1884 = vpop.f32.mrf.mxu0
        %v1885 = vadd.f32 %v1716, %v1884
        %v1886 = vpop.f32.mrf.mxu0
        %v1887 = vadd.f32 %v1718, %v1886
        %1888 = vmatmul.bf16.gmra.mxu0 %v909
        %v1889 = vpop.f32.mrf.mxu0
        %v1890 = vadd.f32 %v1721, %v1889
        %v1891 = vpop.f32.mrf.mxu0
        %v1892 = vadd.f32 %v1723, %v1891
        %1893 = vmatmul.bf16.gmra.mxu0 %v913
        %v1894 = vpop.f32.mrf.mxu0
        %v1895 = vadd.f32 %v1726, %v1894
        %v1896 = vpop.f32.mrf.mxu0
        %v1897 = vadd.f32 %v1728, %v1896
        %1898 = vmatmul.bf16.gmra.mxu0 %v917
        %v1899 = vpop.f32.mrf.mxu0
        %v1900 = vadd.f32 %v1731, %v1899
        %v1901 = vpop.f32.mrf.mxu0
        %v1902 = vadd.f32 %v1733, %v1901
        %1903 = vmatmul.bf16.gmra.mxu0 %v921
        %v1904 = vpop.f32.mrf.mxu0
        %v1905 = vadd.f32 %v1736, %v1904
        %v1906 = vpop.f32.mrf.mxu0
        %v1907 = vadd.f32 %v1738, %v1906
        %1908 = vmatmul.bf16.gmra.mxu0 %v925
        %v1909 = vpop.f32.mrf.mxu0
        %v1910 = vadd.f32 %v1741, %v1909
        %v1911 = vpop.f32.mrf.mxu0
        %v1912 = vadd.f32 %v1743, %v1911
        %1913 = vmatmul.bf16.gmra.mxu0 %v929
        %v1914 = vpop.f32.mrf.mxu0
        %v1915 = vadd.f32 %v1746, %v1914
        %v1916 = vpop.f32.mrf.mxu0
        %v1917 = vadd.f32 %v1748, %v1916
        %1918 = vmatmul.bf16.gmra.mxu0 %v933
        %v1919 = vpop.f32.mrf.mxu0
        %v1920 = vadd.f32 %v1751, %v1919
        %v1921 = vpop.f32.mrf.mxu0
        %v1922 = vadd.f32 %v1753, %v1921
        %1923 = vmatmul.bf16.gmra.mxu0 %v937
        %v1924 = vpop.f32.mrf.mxu0
        %v1925 = vadd.f32 %v1756, %v1924
        %v1926 = vpop.f32.mrf.mxu0
        %v1927 = vadd.f32 %v1758, %v1926
        %1928 = vmatmul.bf16.gmra.mxu0 %v941
        %v1929 = vpop.f32.mrf.mxu0
        %v1930 = vadd.f32 %v1761, %v1929
        %v1931 = vpop.f32.mrf.mxu0
        %v1932 = vadd.f32 %v1763, %v1931
        %1933 = vmatmul.bf16.gmra.mxu0 %v945
        %v1934 = vpop.f32.mrf.mxu0
        %v1935 = vadd.f32 %v1766, %v1934
        %v1936 = vpop.f32.mrf.mxu0
        %v1937 = vadd.f32 %v1768, %v1936
        %1938 = vmatmul.bf16.gmra.mxu0 %v949
        %v1939 = vpop.f32.mrf.mxu0
        %v1940 = vadd.f32 %v1771, %v1939
        %v1941 = vpop.f32.mrf.mxu0
        %v1942 = vadd.f32 %v1773, %v1941
        %1943 = vmatmul.bf16.gmra.mxu0 %v953
        %v1944 = vpop.f32.mrf.mxu0
        %v1945 = vadd.f32 %v1776, %v1944
        %v1946 = vpop.f32.mrf.mxu0
        %v1947 = vadd.f32 %v1778, %v1946
        %1948 = vmatmul.bf16.gmra.mxu0 %v957
        %v1949 = vpop.f32.mrf.mxu0
        %v1950 = vadd.f32 %v1781, %v1949
        %v1951 = vpop.f32.mrf.mxu0
        %v1952 = vadd.f32 %v1783, %v1951
        %1953 = vdwg.mxu0
        %v1954 = vld [vmem:[%s251] sm:$0xff]
        %v1955 = vld [vmem:[%s251 + $0x8] sm:$0xff]
        %v1956 = vld [vmem:[%s251 + $0x10] sm:$0xff]
        %v1957 = vld [vmem:[%s251 + $0x18] sm:$0xff]
        %v1958 = vld [vmem:[%s251 + $0x20] sm:$0xff]
        %v1959 = vld [vmem:[%s251 + $0x28] sm:$0xff]
        %v1960 = vld [vmem:[%s251 + $0x30] sm:$0xff]
        %v1961 = vld [vmem:[%s251 + $0x38] sm:$0xff]
        %v1962 = vld [vmem:[%s251 + $0x40] sm:$0xff]
        %v1963 = vld [vmem:[%s251 + $0x48] sm:$0xff]
        %v1964 = vld [vmem:[%s251 + $0x50] sm:$0xff]
        %v1965 = vld [vmem:[%s251 + $0x58] sm:$0xff]
        %v1966 = vld [vmem:[%s251 + $0x60] sm:$0xff]
        %v1967 = vld [vmem:[%s251 + $0x68] sm:$0xff]
        %v1968 = vld [vmem:[%s251 + $0x70] sm:$0xff]
        %v1969 = vld [vmem:[%s251 + $0x78] sm:$0xff]
        %v1970 = vld [vmem:[%s251 + $0x80] sm:$0xff]
        %v1971 = vld [vmem:[%s251 + $0x88] sm:$0xff]
        %v1972 = vld [vmem:[%s251 + $0x90] sm:$0xff]
        %v1973 = vld [vmem:[%s251 + $0x98] sm:$0xff]
        %v1974 = vld [vmem:[%s251 + $0xa0] sm:$0xff]
        %v1975 = vld [vmem:[%s251 + $0xa8] sm:$0xff]
        %v1976 = vld [vmem:[%s251 + $0xb0] sm:$0xff]
        %v1977 = vld [vmem:[%s251 + $0xb8] sm:$0xff]
        %v1978 = vld [vmem:[%s251 + $0xc0] sm:$0xff]
        %v1979 = vld [vmem:[%s251 + $0xc8] sm:$0xff]
        %v1980 = vld [vmem:[%s251 + $0xd0] sm:$0xff]
        %v1981 = vld [vmem:[%s251 + $0xd8] sm:$0xff]
        %v1982 = vld [vmem:[%s251 + $0xe0] sm:$0xff]
        %v1983 = vld [vmem:[%s251 + $0xe8] sm:$0xff]
        %v1984 = vld [vmem:[%s251 + $0xf0] sm:$0xff]
        %v1985 = vld [vmem:[%s251 + $0xf8] sm:$0xff]
        %v1986 = vld [vmem:[%s251 + $0x100] sm:$0xff]
        %v1987 = vld [vmem:[%s251 + $0x108] sm:$0xff]
        %v1988 = vld [vmem:[%s251 + $0x110] sm:$0xff]
        %v1989 = vld [vmem:[%s251 + $0x118] sm:$0xff]
        %v1990 = vld [vmem:[%s251 + $0x120] sm:$0xff]
        %v1991 = vld [vmem:[%s251 + $0x128] sm:$0xff]
        %v1992 = vld [vmem:[%s251 + $0x130] sm:$0xff]
        %v1993 = vld [vmem:[%s251 + $0x138] sm:$0xff]
        %v1994 = vld [vmem:[%s251 + $0x140] sm:$0xff]
        %v1995 = vld [vmem:[%s251 + $0x148] sm:$0xff]
        %v1996 = vld [vmem:[%s251 + $0x150] sm:$0xff]
        %v1997 = vld [vmem:[%s251 + $0x158] sm:$0xff]
        %v1998 = vld [vmem:[%s251 + $0x160] sm:$0xff]
        %v1999 = vld [vmem:[%s251 + $0x168] sm:$0xff]
        %v2000 = vld [vmem:[%s251 + $0x170] sm:$0xff]
        %v2001 = vld [vmem:[%s251 + $0x178] sm:$0xff]
        %v2002 = vld [vmem:[%s251 + $0x180] sm:$0xff]
        %v2003 = vld [vmem:[%s251 + $0x188] sm:$0xff]
        %v2004 = vld [vmem:[%s251 + $0x190] sm:$0xff]
        %v2005 = vld [vmem:[%s251 + $0x198] sm:$0xff]
        %v2006 = vld [vmem:[%s251 + $0x1a0] sm:$0xff]
        %v2007 = vld [vmem:[%s251 + $0x1a8] sm:$0xff]
        %v2008 = vld [vmem:[%s251 + $0x1b0] sm:$0xff]
        %v2009 = vld [vmem:[%s251 + $0x1b8] sm:$0xff]
        %v2010 = vld [vmem:[%s251 + $0x1c0] sm:$0xff]
        %v2011 = vld [vmem:[%s251 + $0x1c8] sm:$0xff]
        %v2012 = vld [vmem:[%s251 + $0x1d0] sm:$0xff]
        %v2013 = vld [vmem:[%s251 + $0x1d8] sm:$0xff]
        %v2014 = vld [vmem:[%s251 + $0x1e0] sm:$0xff]
        %v2015 = vld [vmem:[%s251 + $0x1e8] sm:$0xff]
        %v2016 = vld [vmem:[%s251 + $0x1f0] sm:$0xff]
        %v2017 = vld [vmem:[%s251 + $0x1f8] sm:$0xff]
        %2019 = vset.pattern.permute.xlu0 0
        %2020 = vperm.xlu0 %2019, %v1954
        %v2021 = vpop.permute.xlu0 %2020
        %2024 = vset.pattern.permute.xlu0 0
        %2025 = vperm.xlu0 %2024, %v1955
        %v2026 = vpop.permute.xlu0 %2025
        %2029 = vset.pattern.permute.xlu0 0
        %2030 = vperm.xlu0 %2029, %v1956
        %v2031 = vpop.permute.xlu0 %2030
        %2034 = vset.pattern.permute.xlu0 0
        %2035 = vperm.xlu0 %2034, %v1957
        %v2036 = vpop.permute.xlu0 %2035
        %2039 = vset.pattern.permute.xlu0 0
        %2040 = vperm.xlu0 %2039, %v1958
        %v2041 = vpop.permute.xlu0 %2040
        %2044 = vset.pattern.permute.xlu0 0
        %2045 = vperm.xlu0 %2044, %v1959
        %v2046 = vpop.permute.xlu0 %2045
        %2049 = vset.pattern.permute.xlu0 0
        %2050 = vperm.xlu0 %2049, %v1960
        %v2051 = vpop.permute.xlu0 %2050
        %2054 = vset.pattern.permute.xlu0 0
        %2055 = vperm.xlu0 %2054, %v1961
        %v2056 = vpop.permute.xlu0 %2055
        %2059 = vset.pattern.permute.xlu0 0
        %2060 = vperm.xlu0 %2059, %v1962
        %v2061 = vpop.permute.xlu0 %2060
        %2064 = vset.pattern.permute.xlu0 0
        %2065 = vperm.xlu0 %2064, %v1963
        %v2066 = vpop.permute.xlu0 %2065
        %2069 = vset.pattern.permute.xlu0 0
        %2070 = vperm.xlu0 %2069, %v1964
        %v2071 = vpop.permute.xlu0 %2070
        %2074 = vset.pattern.permute.xlu0 0
        %2075 = vperm.xlu0 %2074, %v1965
        %v2076 = vpop.permute.xlu0 %2075
        %2079 = vset.pattern.permute.xlu0 0
        %2080 = vperm.xlu0 %2079, %v1966
        %v2081 = vpop.permute.xlu0 %2080
        %2084 = vset.pattern.permute.xlu0 0
        %2085 = vperm.xlu0 %2084, %v1967
        %v2086 = vpop.permute.xlu0 %2085
        %2089 = vset.pattern.permute.xlu0 0
        %2090 = vperm.xlu0 %2089, %v1968
        %v2091 = vpop.permute.xlu0 %2090
        %2094 = vset.pattern.permute.xlu0 0
        %2095 = vperm.xlu0 %2094, %v1969
        %v2096 = vpop.permute.xlu0 %2095
        %2099 = vset.pattern.permute.xlu0 0
        %2100 = vperm.xlu0 %2099, %v1970
        %v2101 = vpop.permute.xlu0 %2100
        %2104 = vset.pattern.permute.xlu0 0
        %2105 = vperm.xlu0 %2104, %v1971
        %v2106 = vpop.permute.xlu0 %2105
        %2109 = vset.pattern.permute.xlu0 0
        %2110 = vperm.xlu0 %2109, %v1972
        %v2111 = vpop.permute.xlu0 %2110
        %2114 = vset.pattern.permute.xlu0 0
        %2115 = vperm.xlu0 %2114, %v1973
        %v2116 = vpop.permute.xlu0 %2115
        %2119 = vset.pattern.permute.xlu0 0
        %2120 = vperm.xlu0 %2119, %v1974
        %v2121 = vpop.permute.xlu0 %2120
        %2124 = vset.pattern.permute.xlu0 0
        %2125 = vperm.xlu0 %2124, %v1975
        %v2126 = vpop.permute.xlu0 %2125
        %2129 = vset.pattern.permute.xlu0 0
        %2130 = vperm.xlu0 %2129, %v1976
        %v2131 = vpop.permute.xlu0 %2130
        %2134 = vset.pattern.permute.xlu0 0
        %2135 = vperm.xlu0 %2134, %v1977
        %v2136 = vpop.permute.xlu0 %2135
        %2139 = vset.pattern.permute.xlu0 0
        %2140 = vperm.xlu0 %2139, %v1978
        %v2141 = vpop.permute.xlu0 %2140
        %2144 = vset.pattern.permute.xlu0 0
        %2145 = vperm.xlu0 %2144, %v1979
        %v2146 = vpop.permute.xlu0 %2145
        %2149 = vset.pattern.permute.xlu0 0
        %2150 = vperm.xlu0 %2149, %v1980
        %v2151 = vpop.permute.xlu0 %2150
        %2154 = vset.pattern.permute.xlu0 0
        %2155 = vperm.xlu0 %2154, %v1981
        %v2156 = vpop.permute.xlu0 %2155
        %2159 = vset.pattern.permute.xlu0 0
        %2160 = vperm.xlu0 %2159, %v1982
        %v2161 = vpop.permute.xlu0 %2160
        %2164 = vset.pattern.permute.xlu0 0
        %2165 = vperm.xlu0 %2164, %v1983
        %v2166 = vpop.permute.xlu0 %2165
        %2169 = vset.pattern.permute.xlu0 0
        %2170 = vperm.xlu0 %2169, %v1984
        %v2171 = vpop.permute.xlu0 %2170
        %2174 = vset.pattern.permute.xlu0 0
        %2175 = vperm.xlu0 %2174, %v1985
        %v2176 = vpop.permute.xlu0 %2175
        %2179 = vset.pattern.permute.xlu0 0
        %2180 = vperm.xlu0 %2179, %v1986
        %v2181 = vpop.permute.xlu0 %2180
        %2184 = vset.pattern.permute.xlu0 0
        %2185 = vperm.xlu0 %2184, %v1987
        %v2186 = vpop.permute.xlu0 %2185
        %2189 = vset.pattern.permute.xlu0 0
        %2190 = vperm.xlu0 %2189, %v1988
        %v2191 = vpop.permute.xlu0 %2190
        %2194 = vset.pattern.permute.xlu0 0
        %2195 = vperm.xlu0 %2194, %v1989
        %v2196 = vpop.permute.xlu0 %2195
        %2199 = vset.pattern.permute.xlu0 0
        %2200 = vperm.xlu0 %2199, %v1990
        %v2201 = vpop.permute.xlu0 %2200
        %2204 = vset.pattern.permute.xlu0 0
        %2205 = vperm.xlu0 %2204, %v1991
        %v2206 = vpop.permute.xlu0 %2205
        %2209 = vset.pattern.permute.xlu0 0
        %2210 = vperm.xlu0 %2209, %v1992
        %v2211 = vpop.permute.xlu0 %2210
        %2214 = vset.pattern.permute.xlu0 0
        %2215 = vperm.xlu0 %2214, %v1993
        %v2216 = vpop.permute.xlu0 %2215
        %2219 = vset.pattern.permute.xlu0 0
        %2220 = vperm.xlu0 %2219, %v1994
        %v2221 = vpop.permute.xlu0 %2220
        %2224 = vset.pattern.permute.xlu0 0
        %2225 = vperm.xlu0 %2224, %v1995
        %v2226 = vpop.permute.xlu0 %2225
        %2229 = vset.pattern.permute.xlu0 0
        %2230 = vperm.xlu0 %2229, %v1996
        %v2231 = vpop.permute.xlu0 %2230
        %2234 = vset.pattern.permute.xlu0 0
        %2235 = vperm.xlu0 %2234, %v1997
        %v2236 = vpop.permute.xlu0 %2235
        %2239 = vset.pattern.permute.xlu0 0
        %2240 = vperm.xlu0 %2239, %v1998
        %v2241 = vpop.permute.xlu0 %2240
        %2244 = vset.pattern.permute.xlu0 0
        %2245 = vperm.xlu0 %2244, %v1999
        %v2246 = vpop.permute.xlu0 %2245
        %2249 = vset.pattern.permute.xlu0 0
        %2250 = vperm.xlu0 %2249, %v2000
        %v2251 = vpop.permute.xlu0 %2250
        %2254 = vset.pattern.permute.xlu0 0
        %2255 = vperm.xlu0 %2254, %v2001
        %v2256 = vpop.permute.xlu0 %2255
        %2259 = vset.pattern.permute.xlu0 0
        %2260 = vperm.xlu0 %2259, %v2002
        %v2261 = vpop.permute.xlu0 %2260
        %2264 = vset.pattern.permute.xlu0 0
        %2265 = vperm.xlu0 %2264, %v2003
        %v2266 = vpop.permute.xlu0 %2265
        %2269 = vset.pattern.permute.xlu0 0
        %2270 = vperm.xlu0 %2269, %v2004
        %v2271 = vpop.permute.xlu0 %2270
        %2274 = vset.pattern.permute.xlu0 0
        %2275 = vperm.xlu0 %2274, %v2005
        %v2276 = vpop.permute.xlu0 %2275
        %2279 = vset.pattern.permute.xlu0 0
        %2280 = vperm.xlu0 %2279, %v2006
        %v2281 = vpop.permute.xlu0 %2280
        %2284 = vset.pattern.permute.xlu0 0
        %2285 = vperm.xlu0 %2284, %v2007
        %v2286 = vpop.permute.xlu0 %2285
        %2289 = vset.pattern.permute.xlu0 0
        %2290 = vperm.xlu0 %2289, %v2008
        %v2291 = vpop.permute.xlu0 %2290
        %2294 = vset.pattern.permute.xlu0 0
        %2295 = vperm.xlu0 %2294, %v2009
        %v2296 = vpop.permute.xlu0 %2295
        %2299 = vset.pattern.permute.xlu0 0
        %2300 = vperm.xlu0 %2299, %v2010
        %v2301 = vpop.permute.xlu0 %2300
        %2304 = vset.pattern.permute.xlu0 0
        %2305 = vperm.xlu0 %2304, %v2011
        %v2306 = vpop.permute.xlu0 %2305
        %2309 = vset.pattern.permute.xlu0 0
        %2310 = vperm.xlu0 %2309, %v2012
        %v2311 = vpop.permute.xlu0 %2310
        %2314 = vset.pattern.permute.xlu0 0
        %2315 = vperm.xlu0 %2314, %v2013
        %v2316 = vpop.permute.xlu0 %2315
        %2319 = vset.pattern.permute.xlu0 0
        %2320 = vperm.xlu0 %2319, %v2014
        %v2321 = vpop.permute.xlu0 %2320
        %2324 = vset.pattern.permute.xlu0 0
        %2325 = vperm.xlu0 %2324, %v2015
        %v2326 = vpop.permute.xlu0 %2325
        %2329 = vset.pattern.permute.xlu0 0
        %2330 = vperm.xlu0 %2329, %v2016
        %v2331 = vpop.permute.xlu0 %2330
        %2334 = vset.pattern.permute.xlu0 0
        %2335 = vperm.xlu0 %2334, %v2017
        %v2336 = vpop.permute.xlu0 %2335
        %v2338 = vmul.f32 %v1795, %v2021
        %v2339 = vmul.f32 %v1797, %v2026
        %v2340 = vmul.f32 %v1800, %v2031
        %v2341 = vmul.f32 %v1802, %v2036
        %v2342 = vmul.f32 %v1805, %v2041
        %v2343 = vmul.f32 %v1807, %v2046
        %v2344 = vmul.f32 %v1810, %v2051
        %v2345 = vmul.f32 %v1812, %v2056
        %v2346 = vmul.f32 %v1815, %v2061
        %v2347 = vmul.f32 %v1817, %v2066
        %v2348 = vmul.f32 %v1820, %v2071
        %v2349 = vmul.f32 %v1822, %v2076
        %v2350 = vmul.f32 %v1825, %v2081
        %v2351 = vmul.f32 %v1827, %v2086
        %v2352 = vmul.f32 %v1830, %v2091
        %v2353 = vmul.f32 %v1832, %v2096
        %v2354 = vmul.f32 %v1835, %v2101
        %v2355 = vmul.f32 %v1837, %v2106
        %v2356 = vmul.f32 %v1840, %v2111
        %v2357 = vmul.f32 %v1842, %v2116
        %v2358 = vmul.f32 %v1845, %v2121
        %v2359 = vmul.f32 %v1847, %v2126
        %v2360 = vmul.f32 %v1850, %v2131
        %v2361 = vmul.f32 %v1852, %v2136
        %v2362 = vmul.f32 %v1855, %v2141
        %v2363 = vmul.f32 %v1857, %v2146
        %v2364 = vmul.f32 %v1860, %v2151
        %v2365 = vmul.f32 %v1862, %v2156
        %v2366 = vmul.f32 %v1865, %v2161
        %v2367 = vmul.f32 %v1867, %v2166
        %v2368 = vmul.f32 %v1870, %v2171
        %v2369 = vmul.f32 %v1872, %v2176
        %v2370 = vmul.f32 %v1875, %v2181
        %v2371 = vmul.f32 %v1877, %v2186
        %v2372 = vmul.f32 %v1880, %v2191
        %v2373 = vmul.f32 %v1882, %v2196
        %v2374 = vmul.f32 %v1885, %v2201
        %v2375 = vmul.f32 %v1887, %v2206
        %v2376 = vmul.f32 %v1890, %v2211
        %v2377 = vmul.f32 %v1892, %v2216
        %v2378 = vmul.f32 %v1895, %v2221
        %v2379 = vmul.f32 %v1897, %v2226
        %v2380 = vmul.f32 %v1900, %v2231
        %v2381 = vmul.f32 %v1902, %v2236
        %v2382 = vmul.f32 %v1905, %v2241
        %v2383 = vmul.f32 %v1907, %v2246
        %v2384 = vmul.f32 %v1910, %v2251
        %v2385 = vmul.f32 %v1912, %v2256
        %v2386 = vmul.f32 %v1915, %v2261
        %v2387 = vmul.f32 %v1917, %v2266
        %v2388 = vmul.f32 %v1920, %v2271
        %v2389 = vmul.f32 %v1922, %v2276
        %v2390 = vmul.f32 %v1925, %v2281
        %v2391 = vmul.f32 %v1927, %v2286
        %v2392 = vmul.f32 %v1930, %v2291
        %v2393 = vmul.f32 %v1932, %v2296
        %v2394 = vmul.f32 %v1935, %v2301
        %v2395 = vmul.f32 %v1937, %v2306
        %v2396 = vmul.f32 %v1940, %v2311
        %v2397 = vmul.f32 %v1942, %v2316
        %v2398 = vmul.f32 %v1945, %v2321
        %v2399 = vmul.f32 %v1947, %v2326
        %v2400 = vmul.f32 %v1950, %v2331
        %v2401 = vmul.f32 %v1952, %v2336
        %v2402 = vpack.c.bf16 %v2338, %v2338
        %v2403 = vpack.c.bf16 %v2339, %v2339
        %v2404 = vpack.c.bf16 %v2340, %v2340
        %v2405 = vpack.c.bf16 %v2341, %v2341
        %v2406 = vpack.c.bf16 %v2342, %v2342
        %v2407 = vpack.c.bf16 %v2343, %v2343
        %v2408 = vpack.c.bf16 %v2344, %v2344
        %v2409 = vpack.c.bf16 %v2345, %v2345
        %v2410 = vpack.c.bf16 %v2346, %v2346
        %v2411 = vpack.c.bf16 %v2347, %v2347
        %v2412 = vpack.c.bf16 %v2348, %v2348
        %v2413 = vpack.c.bf16 %v2349, %v2349
        %v2414 = vpack.c.bf16 %v2350, %v2350
        %v2415 = vpack.c.bf16 %v2351, %v2351
        %v2416 = vpack.c.bf16 %v2352, %v2352
        %v2417 = vpack.c.bf16 %v2353, %v2353
        %v2418 = vpack.c.bf16 %v2354, %v2354
        %v2419 = vpack.c.bf16 %v2355, %v2355
        %v2420 = vpack.c.bf16 %v2356, %v2356
        %v2421 = vpack.c.bf16 %v2357, %v2357
        %v2422 = vpack.c.bf16 %v2358, %v2358
        %v2423 = vpack.c.bf16 %v2359, %v2359
        %v2424 = vpack.c.bf16 %v2360, %v2360
        %v2425 = vpack.c.bf16 %v2361, %v2361
        %v2426 = vpack.c.bf16 %v2362, %v2362
        %v2427 = vpack.c.bf16 %v2363, %v2363
        %v2428 = vpack.c.bf16 %v2364, %v2364
        %v2429 = vpack.c.bf16 %v2365, %v2365
        %v2430 = vpack.c.bf16 %v2366, %v2366
        %v2431 = vpack.c.bf16 %v2367, %v2367
        %v2432 = vpack.c.bf16 %v2368, %v2368
        %v2433 = vpack.c.bf16 %v2369, %v2369
        %v2434 = vpack.c.bf16 %v2370, %v2370
        %v2435 = vpack.c.bf16 %v2371, %v2371
        %v2436 = vpack.c.bf16 %v2372, %v2372
        %v2437 = vpack.c.bf16 %v2373, %v2373
        %v2438 = vpack.c.bf16 %v2374, %v2374
        %v2439 = vpack.c.bf16 %v2375, %v2375
        %v2440 = vpack.c.bf16 %v2376, %v2376
        %v2441 = vpack.c.bf16 %v2377, %v2377
        %v2442 = vpack.c.bf16 %v2378, %v2378
        %v2443 = vpack.c.bf16 %v2379, %v2379
        %v2444 = vpack.c.bf16 %v2380, %v2380
        %v2445 = vpack.c.bf16 %v2381, %v2381
        %v2446 = vpack.c.bf16 %v2382, %v2382
        %v2447 = vpack.c.bf16 %v2383, %v2383
        %v2448 = vpack.c.bf16 %v2384, %v2384
        %v2449 = vpack.c.bf16 %v2385, %v2385
        %v2450 = vpack.c.bf16 %v2386, %v2386
        %v2451 = vpack.c.bf16 %v2387, %v2387
        %v2452 = vpack.c.bf16 %v2388, %v2388
        %v2453 = vpack.c.bf16 %v2389, %v2389
        %v2454 = vpack.c.bf16 %v2390, %v2390
        %v2455 = vpack.c.bf16 %v2391, %v2391
        %v2456 = vpack.c.bf16 %v2392, %v2392
        %v2457 = vpack.c.bf16 %v2393, %v2393
        %v2458 = vpack.c.bf16 %v2394, %v2394
        %v2459 = vpack.c.bf16 %v2395, %v2395
        %v2460 = vpack.c.bf16 %v2396, %v2396
        %v2461 = vpack.c.bf16 %v2397, %v2397
        %v2462 = vpack.c.bf16 %v2398, %v2398
        %v2463 = vpack.c.bf16 %v2399, %v2399
        %v2464 = vpack.c.bf16 %v2400, %v2400
        %v2465 = vpack.c.bf16 %v2401, %v2401
        %2466 = vst [vmem:[%s238] sm:$0xf] %v2402
        %2467 = vst [vmem:[%s238 + $0x4] sm:$0xf] %v2403
        %2468 = vst [vmem:[%s238 + $0x8] sm:$0xf] %v2404
        %2469 = vst [vmem:[%s238 + $0xc] sm:$0xf] %v2405
        %2470 = vst [vmem:[%s238 + $0x10] sm:$0xf] %v2406
        %2471 = vst [vmem:[%s238 + $0x14] sm:$0xf] %v2407
        %2472 = vst [vmem:[%s238 + $0x18] sm:$0xf] %v2408
        %2473 = vst [vmem:[%s238 + $0x1c] sm:$0xf] %v2409
        %2474 = vst [vmem:[%s238 + $0x20] sm:$0xf] %v2410
        %2475 = vst [vmem:[%s238 + $0x24] sm:$0xf] %v2411
        %2476 = vst [vmem:[%s238 + $0x28] sm:$0xf] %v2412
        %2477 = vst [vmem:[%s238 + $0x2c] sm:$0xf] %v2413
        %2478 = vst [vmem:[%s238 + $0x30] sm:$0xf] %v2414
        %2479 = vst [vmem:[%s238 + $0x34] sm:$0xf] %v2415
        %2480 = vst [vmem:[%s238 + $0x38] sm:$0xf] %v2416
        %2481 = vst [vmem:[%s238 + $0x3c] sm:$0xf] %v2417
        %2482 = vst [vmem:[%s238 + $0x40] sm:$0xf] %v2418
        %2483 = vst [vmem:[%s238 + $0x44] sm:$0xf] %v2419
        %2484 = vst [vmem:[%s238 + $0x48] sm:$0xf] %v2420
        %2485 = vst [vmem:[%s238 + $0x4c] sm:$0xf] %v2421
        %2486 = vst [vmem:[%s238 + $0x50] sm:$0xf] %v2422
        %2487 = vst [vmem:[%s238 + $0x54] sm:$0xf] %v2423
        %2488 = vst [vmem:[%s238 + $0x58] sm:$0xf] %v2424
        %2489 = vst [vmem:[%s238 + $0x5c] sm:$0xf] %v2425
        %2490 = vst [vmem:[%s238 + $0x60] sm:$0xf] %v2426
        %2491 = vst [vmem:[%s238 + $0x64] sm:$0xf] %v2427
        %2492 = vst [vmem:[%s238 + $0x68] sm:$0xf] %v2428
        %2493 = vst [vmem:[%s238 + $0x6c] sm:$0xf] %v2429
        %2494 = vst [vmem:[%s238 + $0x70] sm:$0xf] %v2430
        %2495 = vst [vmem:[%s238 + $0x74] sm:$0xf] %v2431
        %2496 = vst [vmem:[%s238 + $0x78] sm:$0xf] %v2432
        %2497 = vst [vmem:[%s238 + $0x7c] sm:$0xf] %v2433
        %2498 = vst [vmem:[%s238 + $0x80] sm:$0xf] %v2434
        %2499 = vst [vmem:[%s238 + $0x84] sm:$0xf] %v2435
        %2500 = vst [vmem:[%s238 + $0x88] sm:$0xf] %v2436
        %2501 = vst [vmem:[%s238 + $0x8c] sm:$0xf] %v2437
        %2502 = vst [vmem:[%s238 + $0x90] sm:$0xf] %v2438
        %2503 = vst [vmem:[%s238 + $0x94] sm:$0xf] %v2439
        %2504 = vst [vmem:[%s238 + $0x98] sm:$0xf] %v2440
        %2505 = vst [vmem:[%s238 + $0x9c] sm:$0xf] %v2441
        %2506 = vst [vmem:[%s238 + $0xa0] sm:$0xf] %v2442
        %2507 = vst [vmem:[%s238 + $0xa4] sm:$0xf] %v2443
        %2508 = vst [vmem:[%s238 + $0xa8] sm:$0xf] %v2444
        %2509 = vst [vmem:[%s238 + $0xac] sm:$0xf] %v2445
        %2510 = vst [vmem:[%s238 + $0xb0] sm:$0xf] %v2446
        %2511 = vst [vmem:[%s238 + $0xb4] sm:$0xf] %v2447
        %2512 = vst [vmem:[%s238 + $0xb8] sm:$0xf] %v2448
        %2513 = vst [vmem:[%s238 + $0xbc] sm:$0xf] %v2449
        %2514 = vst [vmem:[%s238 + $0xc0] sm:$0xf] %v2450
        %2515 = vst [vmem:[%s238 + $0xc4] sm:$0xf] %v2451
        %2516 = vst [vmem:[%s238 + $0xc8] sm:$0xf] %v2452
        %2517 = vst [vmem:[%s238 + $0xcc] sm:$0xf] %v2453
        %2518 = vst [vmem:[%s238 + $0xd0] sm:$0xf] %v2454
        %2519 = vst [vmem:[%s238 + $0xd4] sm:$0xf] %v2455
        %2520 = vst [vmem:[%s238 + $0xd8] sm:$0xf] %v2456
        %2521 = vst [vmem:[%s238 + $0xdc] sm:$0xf] %v2457
        %2522 = vst [vmem:[%s238 + $0xe0] sm:$0xf] %v2458
        %2523 = vst [vmem:[%s238 + $0xe4] sm:$0xf] %v2459
        %2524 = vst [vmem:[%s238 + $0xe8] sm:$0xf] %v2460
        %2525 = vst [vmem:[%s238 + $0xec] sm:$0xf] %v2461
        %2526 = vst [vmem:[%s238 + $0xf0] sm:$0xf] %v2462
        %2527 = vst [vmem:[%s238 + $0xf4] sm:$0xf] %v2463
        %2528 = vst [vmem:[%s238 + $0xf8] sm:$0xf] %v2464
        %2529 = vst [vmem:[%s238 + $0xfc] sm:$0xf] %v2465
        %v2530 = vadd.f32 %v2338, %v2339
        %v2531 = vadd.f32 %v2530, %v2340
        %v2532 = vadd.f32 %v2531, %v2341
        %v2533 = vadd.f32 %v2532, %v2342
        %v2534 = vadd.f32 %v2533, %v2343
        %v2535 = vadd.f32 %v2534, %v2344
        %v2536 = vadd.f32 %v2535, %v2345
        %v2537 = vadd.f32 %v2536, %v2346
        %v2538 = vadd.f32 %v2537, %v2347
        %v2539 = vadd.f32 %v2538, %v2348
        %v2540 = vadd.f32 %v2539, %v2349
        %v2541 = vadd.f32 %v2540, %v2350
        %v2542 = vadd.f32 %v2541, %v2351
        %v2543 = vadd.f32 %v2542, %v2352
        %v2544 = vadd.f32 %v2543, %v2353
        %v2545 = vadd.f32 %v2544, %v2354
        %v2546 = vadd.f32 %v2545, %v2355
        %v2547 = vadd.f32 %v2546, %v2356
        %v2548 = vadd.f32 %v2547, %v2357
        %v2549 = vadd.f32 %v2548, %v2358
        %v2550 = vadd.f32 %v2549, %v2359
        %v2551 = vadd.f32 %v2550, %v2360
        %v2552 = vadd.f32 %v2551, %v2361
        %v2553 = vadd.f32 %v2552, %v2362
        %v2554 = vadd.f32 %v2553, %v2363
        %v2555 = vadd.f32 %v2554, %v2364
        %v2556 = vadd.f32 %v2555, %v2365
        %v2557 = vadd.f32 %v2556, %v2366
        %v2558 = vadd.f32 %v2557, %v2367
        %v2559 = vadd.f32 %v2558, %v2368
        %v2560 = vadd.f32 %v2559, %v2369
        %v2561 = vadd.f32 %v2560, %v2370
        %v2562 = vadd.f32 %v2561, %v2371
        %v2563 = vadd.f32 %v2562, %v2372
        %v2564 = vadd.f32 %v2563, %v2373
        %v2565 = vadd.f32 %v2564, %v2374
        %v2566 = vadd.f32 %v2565, %v2375
        %v2567 = vadd.f32 %v2566, %v2376
        %v2568 = vadd.f32 %v2567, %v2377
        %v2569 = vadd.f32 %v2568, %v2378
        %v2570 = vadd.f32 %v2569, %v2379
        %v2571 = vadd.f32 %v2570, %v2380
        %v2572 = vadd.f32 %v2571, %v2381
        %v2573 = vadd.f32 %v2572, %v2382
        %v2574 = vadd.f32 %v2573, %v2383
        %v2575 = vadd.f32 %v2574, %v2384
        %v2576 = vadd.f32 %v2575, %v2385
        %v2577 = vadd.f32 %v2576, %v2386
        %v2578 = vadd.f32 %v2577, %v2387
        %v2579 = vadd.f32 %v2578, %v2388
        %v2580 = vadd.f32 %v2579, %v2389
        %v2581 = vadd.f32 %v2580, %v2390
        %v2582 = vadd.f32 %v2581, %v2391
        %v2583 = vadd.f32 %v2582, %v2392
        %v2584 = vadd.f32 %v2583, %v2393
        %v2585 = vadd.f32 %v2584, %v2394
        %v2586 = vadd.f32 %v2585, %v2395
        %v2587 = vadd.f32 %v2586, %v2396
        %v2588 = vadd.f32 %v2587, %v2397
        %v2589 = vadd.f32 %v2588, %v2398
        %v2590 = vadd.f32 %v2589, %v2399
        %v2591 = vadd.f32 %v2590, %v2400
        %v2592 = vadd.f32 %v2591, %v2401
        %v2593 = vrot.slane %v2592, 4
        %v2594 = vadd.f32 %v2592, %v2593
        %v2595 = vrot.slane %v2594, 2
        %v2596 = vadd.f32 %v2594, %v2595
        %v2597 = vrot.slane %v2596, 1
        %v2598 = vadd.f32 %v2596, %v2597
        %2599 = vst [vmem:[%s245] sm:$0x1] %v2598
        %v2600 = vmul.f32 %v2338, %v2338
        %v2601 = vmul.f32 %v2339, %v2339
        %v2602 = vmul.f32 %v2340, %v2340
        %v2603 = vmul.f32 %v2341, %v2341
        %v2604 = vmul.f32 %v2342, %v2342
        %v2605 = vmul.f32 %v2343, %v2343
        %v2606 = vmul.f32 %v2344, %v2344
        %v2607 = vmul.f32 %v2345, %v2345
        %v2608 = vmul.f32 %v2346, %v2346
        %v2609 = vmul.f32 %v2347, %v2347
        %v2610 = vmul.f32 %v2348, %v2348
        %v2611 = vmul.f32 %v2349, %v2349
        %v2612 = vmul.f32 %v2350, %v2350
        %v2613 = vmul.f32 %v2351, %v2351
        %v2614 = vmul.f32 %v2352, %v2352
        %v2615 = vmul.f32 %v2353, %v2353
        %v2616 = vmul.f32 %v2354, %v2354
        %v2617 = vmul.f32 %v2355, %v2355
        %v2618 = vmul.f32 %v2356, %v2356
        %v2619 = vmul.f32 %v2357, %v2357
        %v2620 = vmul.f32 %v2358, %v2358
        %v2621 = vmul.f32 %v2359, %v2359
        %v2622 = vmul.f32 %v2360, %v2360
        %v2623 = vmul.f32 %v2361, %v2361
        %v2624 = vmul.f32 %v2362, %v2362
        %v2625 = vmul.f32 %v2363, %v2363
        %v2626 = vmul.f32 %v2364, %v2364
        %v2627 = vmul.f32 %v2365, %v2365
        %v2628 = vmul.f32 %v2366, %v2366
        %v2629 = vmul.f32 %v2367, %v2367
        %v2630 = vmul.f32 %v2368, %v2368
        %v2631 = vmul.f32 %v2369, %v2369
        %v2632 = vmul.f32 %v2370, %v2370
        %v2633 = vmul.f32 %v2371, %v2371
        %v2634 = vmul.f32 %v2372, %v2372
        %v2635 = vmul.f32 %v2373, %v2373
        %v2636 = vmul.f32 %v2374, %v2374
        %v2637 = vmul.f32 %v2375, %v2375
        %v2638 = vmul.f32 %v2376, %v2376
        %v2639 = vmul.f32 %v2377, %v2377
        %v2640 = vmul.f32 %v2378, %v2378
        %v2641 = vmul.f32 %v2379, %v2379
        %v2642 = vmul.f32 %v2380, %v2380
        %v2643 = vmul.f32 %v2381, %v2381
        %v2644 = vmul.f32 %v2382, %v2382
        %v2645 = vmul.f32 %v2383, %v2383
        %v2646 = vmul.f32 %v2384, %v2384
        %v2647 = vmul.f32 %v2385, %v2385
        %v2648 = vmul.f32 %v2386, %v2386
        %v2649 = vmul.f32 %v2387, %v2387
        %v2650 = vmul.f32 %v2388, %v2388
        %v2651 = vmul.f32 %v2389, %v2389
        %v2652 = vmul.f32 %v2390, %v2390
        %v2653 = vmul.f32 %v2391, %v2391
        %v2654 = vmul.f32 %v2392, %v2392
        %v2655 = vmul.f32 %v2393, %v2393
        %v2656 = vmul.f32 %v2394, %v2394
        %v2657 = vmul.f32 %v2395, %v2395
        %v2658 = vmul.f32 %v2396, %v2396
        %v2659 = vmul.f32 %v2397, %v2397
        %v2660 = vmul.f32 %v2398, %v2398
        %v2661 = vmul.f32 %v2399, %v2399
        %v2662 = vmul.f32 %v2400, %v2400
        %v2663 = vmul.f32 %v2401, %v2401
        %v2664 = vadd.f32 %v2600, %v2601
        %v2665 = vadd.f32 %v2664, %v2602
        %v2666 = vadd.f32 %v2665, %v2603
        %v2667 = vadd.f32 %v2666, %v2604
        %v2668 = vadd.f32 %v2667, %v2605
        %v2669 = vadd.f32 %v2668, %v2606
        %v2670 = vadd.f32 %v2669, %v2607
        %v2671 = vadd.f32 %v2670, %v2608
        %v2672 = vadd.f32 %v2671, %v2609
        %v2673 = vadd.f32 %v2672, %v2610
        %v2674 = vadd.f32 %v2673, %v2611
        %v2675 = vadd.f32 %v2674, %v2612
        %v2676 = vadd.f32 %v2675, %v2613
        %v2677 = vadd.f32 %v2676, %v2614
        %v2678 = vadd.f32 %v2677, %v2615
        %v2679 = vadd.f32 %v2678, %v2616
        %v2680 = vadd.f32 %v2679, %v2617
        %v2681 = vadd.f32 %v2680, %v2618
        %v2682 = vadd.f32 %v2681, %v2619
        %v2683 = vadd.f32 %v2682, %v2620
        %v2684 = vadd.f32 %v2683, %v2621
        %v2685 = vadd.f32 %v2684, %v2622
        %v2686 = vadd.f32 %v2685, %v2623
        %v2687 = vadd.f32 %v2686, %v2624
        %v2688 = vadd.f32 %v2687, %v2625
        %v2689 = vadd.f32 %v2688, %v2626
        %v2690 = vadd.f32 %v2689, %v2627
        %v2691 = vadd.f32 %v2690, %v2628
        %v2692 = vadd.f32 %v2691, %v2629
        %v2693 = vadd.f32 %v2692, %v2630
        %v2694 = vadd.f32 %v2693, %v2631
        %v2695 = vadd.f32 %v2694, %v2632
        %v2696 = vadd.f32 %v2695, %v2633
        %v2697 = vadd.f32 %v2696, %v2634
        %v2698 = vadd.f32 %v2697, %v2635
        %v2699 = vadd.f32 %v2698, %v2636
        %v2700 = vadd.f32 %v2699, %v2637
        %v2701 = vadd.f32 %v2700, %v2638
        %v2702 = vadd.f32 %v2701, %v2639
        %v2703 = vadd.f32 %v2702, %v2640
        %v2704 = vadd.f32 %v2703, %v2641
        %v2705 = vadd.f32 %v2704, %v2642
        %v2706 = vadd.f32 %v2705, %v2643
        %v2707 = vadd.f32 %v2706, %v2644
        %v2708 = vadd.f32 %v2707, %v2645
        %v2709 = vadd.f32 %v2708, %v2646
        %v2710 = vadd.f32 %v2709, %v2647
        %v2711 = vadd.f32 %v2710, %v2648
        %v2712 = vadd.f32 %v2711, %v2649
        %v2713 = vadd.f32 %v2712, %v2650
        %v2714 = vadd.f32 %v2713, %v2651
        %v2715 = vadd.f32 %v2714, %v2652
        %v2716 = vadd.f32 %v2715, %v2653
        %v2717 = vadd.f32 %v2716, %v2654
        %v2718 = vadd.f32 %v2717, %v2655
        %v2719 = vadd.f32 %v2718, %v2656
        %v2720 = vadd.f32 %v2719, %v2657
        %v2721 = vadd.f32 %v2720, %v2658
        %v2722 = vadd.f32 %v2721, %v2659
        %v2723 = vadd.f32 %v2722, %v2660
        %v2724 = vadd.f32 %v2723, %v2661
        %v2725 = vadd.f32 %v2724, %v2662
        %v2726 = vadd.f32 %v2725, %v2663
        %v2727 = vrot.slane %v2726, 4
        %v2728 = vadd.f32 %v2726, %v2727
        %v2729 = vrot.slane %v2728, 2
        %v2730 = vadd.f32 %v2728, %v2729
        %v2731 = vrot.slane %v2730, 1
        %v2732 = vadd.f32 %v2730, %v2731
        %2733 = vst [vmem:[%s245 + $0x1] sm:$0x1] %v2732
        %s2734 = sand.u32 %s106, 1
        %s2735 = scalar_lea.sflag [#allocation4], %s2734
        %s2736 = sand.u32 %s106, 1
        %s2737 = smul.addr %s2736, 256
        %s2738 = scalar_lea.vmem [#allocation5], %s2737
        %s2739 = sand.u32 %s132, 1
        %s2740 = scalar_lea.sflag [#allocation7], %s2739
        %s2741 = sand.u32 %s132, 1
        %s2742 = smul.addr %s2741, 2
        %s2743 = scalar_lea.vmem [#allocation6], %s2742
        // Predicated region
        $region37: #{tpu_custom_call.1} parent=31 // pred_check
          %p2744 = pneg %p116
        $region38: #{tpu_custom_call.1} parent=31 // pred_check_branch
          %2746 = sbr.rel (%p2744) target = $region40
        $region39: #{tpu_custom_call.1} parent=31 // pred_region
          %s2747 = smul.u32 64, %s25
          %2749 = vsyncadd %s2735, 0
          %s2750 = smul.addr %s2747, 4
          %s2751 = scalar_lea.hbm %s3, %s2750
          %s2752 = sshll.u32 %s2738, 4
          %s2753 = int_to_ptr.vmem [resolvable:$true] %s2752
          %s2754 = sshll.u32 %s2751, 4
          %s2755 = int_to_ptr.hbm [resolvable:$true] %s2754
          %2760 = dma.vmem_to_hbm [thread:$0]  %s2753, 4096, %s2755, %s2735, 64, 64, 4
        $region40: #{tpu_custom_call.1} parent=31 // pred_fallthru
          _
        // Predicated region
        $region41: #{tpu_custom_call.1} parent=31 // pred_check
          %p2761 = pneg %p142
        $region42: #{tpu_custom_call.1} parent=31 // pred_check_branch
          %2763 = sbr.rel (%p2761) target = $region44
        $region43: #{tpu_custom_call.1} parent=31 // pred_region
          %2765 = vsyncadd %s2740, 0
          %s2766 = smul.addr %s25, 2
          %s2767 = scalar_lea.hbm %s4, %s2766
          %s2769 = sshll.u32 %s2743, 4
          %s2770 = int_to_ptr.vmem [resolvable:$true] %s2769
          %s2771 = sshll.u32 %s2767, 4
          %s2772 = int_to_ptr.hbm [resolvable:$true] %s2771
          %2774 = dma.vmem_to_hbm [thread:$0]  %s2770, 32, %s2772, %s2740
        $region44: #{tpu_custom_call.1} parent=31 // pred_fallthru
          _
      $region32: #{tpu_custom_call.1} parent=5 // pred_fallthru
        _
      %p2775 = scmp.le.s32.totalorder 2, %s20
      // Predicated region
      $region45: #{tpu_custom_call.1} parent=5 // pred_check
        %p2776 = pneg %p2775
      $region46: #{tpu_custom_call.1} parent=5 // pred_check_branch
        %2778 = sbr.rel (%p2776) target = $region48
      $region47: #{tpu_custom_call.1} parent=5 // pred_region
        %s2779 = ssub.s32 %s20, 2
        // Predicated region
        $region49: #{tpu_custom_call.1} parent=47 // pred_check
          %p2780 = pneg %p122
        $region50: #{tpu_custom_call.1} parent=47 // pred_check_branch
          %2782 = sbr.rel (%p2780) target = $region52
        $region51: #{tpu_custom_call.1} parent=47 // pred_region
          %s2783 = sand.u32 %s107, 1
          %s2784 = scalar_lea.sflag [#allocation4], %s2783
          %s2785 = sand.u32 %s107, 1
          %s2786 = smul.addr %s2785, 256
          %s2787 = scalar_lea.vmem [#allocation5], %s2786
          %2789 = dma.done %s2784, 4096
        $region52: #{tpu_custom_call.1} parent=47 // pred_fallthru
          _
        // Predicated region
        $region53: #{tpu_custom_call.1} parent=47 // pred_check
          %p2790 = pneg %p148
        $region54: #{tpu_custom_call.1} parent=47 // pred_check_branch
          %2792 = sbr.rel (%p2790) target = $region56
        $region55: #{tpu_custom_call.1} parent=47 // pred_region
          %s2793 = sand.u32 %s133, 1
          %s2794 = scalar_lea.sflag [#allocation7], %s2793
          %s2795 = sand.u32 %s133, 1
          %s2796 = smul.addr %s2795, 2
          %s2797 = scalar_lea.vmem [#allocation6], %s2796
          %2799 = dma.done %s2794, 32
        $region56: #{tpu_custom_call.1} parent=47 // pred_fallthru
          _
      $region48: #{tpu_custom_call.1} parent=5 // pred_fallthru
        _
    $region6: #{tpu_custom_call.1} parent=1 // loop_footer
      %s24 = sadd.s32 1, %s20
    $region7: #{tpu_custom_call.1} parent=1 // loop_footer_branch
      %19 = sbr.rel target = $region3
    $region8: #{tpu_custom_call.1} parent=1 // loop_exit
      _
    %2800 = vsyncpa [#allocation3], 1
    %s2801 = scalar_lea.sflag [#allocation3], 1
    %2802 = vsyncpa %s2801, 1
    %2803 = vsyncpa [#allocation4], 1
    %s2804 = scalar_lea.sflag [#allocation4], 1
    %2805 = vsyncpa %s2804, 1
    %2806 = vsyncpa [#allocation7], 1
    %s2807 = scalar_lea.sflag [#allocation7], 1
    %2808 = vsyncpa %s2807, 1

</llo_original>
